<compile_context>
chip_gen: v5e
topology: v5e:2x2
jax: 0.10.0
libtpu: 0.0.40
codegen_flags: <defaults>
</compile_context>

<pallas_src>
import math

import jax
import jax.numpy as jnp
from jax.experimental import pallas as pl

# --- synthetic "BERT" config (small shapes) ----------------------------------
HIDDEN = 32
NUM_HEADS = 4
HEAD_DIM = HIDDEN // NUM_HEADS
INTERMEDIATE = 64
NUM_LAYERS = 2
VOCAB = 128
MAX_POS = 128
TYPE_VOCAB = 2
OUT_DIM = 16
OUT_PAD = 128                  # lane-dense padded output width (sliced to OUT_DIM outside)
SEQ = 8
BATCH = 2
ROWS = BATCH * SEQ             # packed (batch*seq) rows = kernel M dimension
KV_ROWS = NUM_HEADS * ROWS     # head-expanded key/value rows
LN_EPS = 1e-12
NEG_INF = -1e9


# --- in-kernel helpers --------------------------------------------------------
def _layernorm(x, gamma, beta, eps=LN_EPS):
    mean = jnp.mean(x, axis=-1, keepdims=True)
    var = jnp.mean((x - mean) ** 2, axis=-1, keepdims=True)
    return (x - mean) * jax.lax.rsqrt(var + eps) * gamma + beta


def _bf(x):
    # bf16 matmul inputs, f32 accumulation everywhere (preferred_element_type).
    return x.astype(jnp.bfloat16)


# --- fused Pallas kernel: whole forward, single program (no grid) -------------
def fused_encoder_kernel(emb_ref, bias_ref, headmask_ref, segsum_ref, embln_ref,
                         wq_ref, bq_ref, wkv_ref, bkv_ref, wo_ref, bo_ref,
                         wi_ref, bi_ref, wf_ref, bf_ref, lnp_ref,
                         outw_ref, outb_ref, o_ref):
    # emb_ref:      (ROWS, H)           packed summed embeddings (batch folded into rows)
    # bias_ref:     (ROWS, KV_ROWS)     additive mask: 0 same-batch & valid key, -1e9 otherwise
    # headmask_ref: (KV_ROWS, 2H) bf16  block-diag head mask for the tiled [K|V] tile
    # segsum_ref:   (KV_ROWS, KV_ROWS)  bf16 block-ones matrix (per-head softmax denominators)
    bias = bias_ref[...]
    headmask = headmask_ref[...]
    segsum = segsum_ref[...]
    embln = embln_ref[...]                                       # (2, H): [gamma; beta]
    x = _layernorm(emb_ref[...], embln[0:1, :], embln[1:2, :])   # (ROWS, H) f32

    for l in range(NUM_LAYERS):                                  # static unrolled layer loop
        lnp = lnp_ref[l]                                         # (4, H): g1, b1, g2, b2
        xb = _bf(x)

        # Q (already scaled by 1/sqrt(HD), zero-padded to 2H lanes) and [K|V]:
        # two MXU pushes covering every batch element and every head.
        q_wide = jnp.dot(xb, wq_ref[l],
                         preferred_element_type=jnp.float32) + bq_ref[l]      # (ROWS, 2H)
        kv = jnp.dot(xb, wkv_ref[l],
                     preferred_element_type=jnp.float32) + bkv_ref[l]         # (ROWS, 2H)

        # Head-expanded [K|V]: tile rows once per head, keep only that head's lanes.
        kv_exp = jnp.tile(_bf(kv), (NUM_HEADS, 1)) * headmask                 # (KV_ROWS, 2H)

        # All-head, all-batch scores in ONE matmul (contract the 2H lane axis;
        # the V half of q_wide is zero so only Q_h . K_h survives per block).
        s = jax.lax.dot_general(_bf(q_wide), kv_exp, (((1,), (1,)), ((), ())),
                                preferred_element_type=jnp.float32)           # (ROWS, KV_ROWS)

        # Softmax.  No max-subtraction: logits are tiny and masked entries
        # (cross-batch / padding) underflow exp to exactly 0 via the -1e9 bias.
        p = jnp.exp(s + bias)
        denom = jnp.dot(_bf(p), segsum,
                        preferred_element_type=jnp.float32)                   # per-head row sums
        p = p * pl.reciprocal(denom, approx=True)

        # Context (head-concat layout lands in the V half of the lanes) and
        # output projection through the zero-padded Wo (kills the K-half junk).
        ctxw = jnp.dot(_bf(p), kv_exp, preferred_element_type=jnp.float32)    # (ROWS, 2H)
        attn = jnp.dot(_bf(ctxw), wo_ref[l],
                       preferred_element_type=jnp.float32) + bo_ref[l]        # (ROWS, H)

        # Residual + LayerNorm.
        h1 = _layernorm(x + attn, lnp[0:1, :], lnp[1:2, :])

        # Feed-forward: Linear -> GELU -> Linear, residual + LayerNorm.
        inter = jnp.dot(_bf(h1), wi_ref[l],
                        preferred_element_type=jnp.float32) + bi_ref[l]       # (ROWS, I)
        # TODO(synk): HF BERT uses exact erf-GELU; tanh approximation used here.
        inter = jax.nn.gelu(inter, approximate=True)
        ff = jnp.dot(_bf(inter), wf_ref[l],
                     preferred_element_type=jnp.float32) + bf_ref[l]          # (ROWS, H)
        x = _layernorm(h1 + ff, lnp[2:3, :], lnp[3:4, :])

    # CLS rows (row b*SEQ of the packed activations) -> one matmul, one
    # lane-dense (B, OUT_PAD) store.
    cls = jnp.concatenate([x[b * SEQ:b * SEQ + 1, :] for b in range(BATCH)], axis=0)  # (B, H)
    o_ref[...] = jnp.dot(_bf(cls), outw_ref[...],
                         preferred_element_type=jnp.float32) + outb_ref[...]  # (B, OUT_PAD)


# --- pallas_call wrapper ------------------------------------------------------
def frozen_bert_text_encoder(params, input_ids, attention_mask, token_type_ids):
    B, S = input_ids.shape
    assert B == BATCH and S == SEQ

    # Glue: embedding gathers in plain JAX (tiny table lookups, not the hot path),
    # then fold batch into the sublane dimension.
    emb = (params['word_emb'][input_ids]
           + params['pos_emb'][jnp.arange(S)][None, :, :]
           + params['type_emb'][token_type_ids]).astype(jnp.float32)          # (B, S, H)
    emb = emb.reshape(B * S, HIDDEN)                                          # (ROWS, H)

    # Additive attention bias: 0 for same-batch & unmasked key, -1e9 otherwise,
    # tiled across the head blocks.  Computed once; reused by every layer.
    seg = jnp.arange(B * S) // S
    key_ok = attention_mask.reshape(-1) > 0.5
    ok = (seg[:, None] == seg[None, :]) & key_ok[None, :]
    bias = jnp.where(ok, 0.0, NEG_INF).astype(jnp.float32)                    # (ROWS, ROWS)
    bias_full = jnp.tile(bias, (1, NUM_HEADS))                                # (ROWS, KV_ROWS)

    args = (emb, bias_full, params['headmask'], params['segsum'], params['emb_ln'],
            params['wq'], params['bq'], params['wkv'], params['bkv'],
            params['wo'], params['bo'], params['wi'], params['bi'],
            params['wf'], params['bf'], params['ln'],
            params['out_w_pad'], params['out_b_pad'])

    # Rough advisory cost estimate for XLA scheduling.
    flops = int(NUM_LAYERS * 2 * (2 * ROWS * HIDDEN * 2 * HIDDEN            # q_wide + kv
                                  + ROWS * 2 * HIDDEN * KV_ROWS             # scores
                                  + ROWS * KV_ROWS * KV_ROWS                # denominators
                                  + ROWS * KV_ROWS * 2 * HIDDEN             # context
                                  + ROWS * 2 * HIDDEN * HIDDEN              # out proj
                                  + 2 * ROWS * HIDDEN * INTERMEDIATE)       # ffn
                + 2 * BATCH * HIDDEN * OUT_PAD)
    transcendentals = int(NUM_LAYERS * (ROWS * KV_ROWS + ROWS * INTERMEDIATE))
    bytes_accessed = int(sum(int(a.size) * a.dtype.itemsize for a in args)
                         + BATCH * OUT_PAD * 4)

    out = pl.pallas_call(
        fused_encoder_kernel,
        out_shape=jax.ShapeDtypeStruct((BATCH, OUT_PAD), jnp.float32),
        cost_estimate=pl.CostEstimate(flops=flops,
                                      transcendentals=transcendentals,
                                      bytes_accessed=bytes_accessed),
    )(*args)
    return out[:, :OUT_DIM]


# --- parameters (deterministic synthetic init; NOT a checkpoint load) ---------
def init_params(key):
    keys = iter(jax.random.split(key, 64))

    def norm(shape, scale=0.02):
        return (scale * jax.random.normal(next(keys), shape)).astype(jnp.float32)

    def linear(out_f, in_f):
        # PyTorch nn.Linear convention: W (out, in), y = x @ W.T + b
        return norm((out_f, in_f)), norm((1, out_f))

    scale = 1.0 / math.sqrt(HEAD_DIM)
    ones = jnp.ones((1, HIDDEN), jnp.float32)
    zeros = jnp.zeros((1, HIDDEN), jnp.float32)
    zH = jnp.zeros((HIDDEN, HIDDEN), jnp.float32)

    wq_l, bq_l, wkv_l, bkv_l, wo_l, bo_l = [], [], [], [], [], []
    wi_l, bi_l, wf_l, bf_l, ln_l = [], [], [], [], []
    for _ in range(NUM_LAYERS):
        wq, bq = linear(HIDDEN, HIDDEN)
        wk, bk = linear(HIDDEN, HIDDEN)
        wv, bv = linear(HIDDEN, HIDDEN)
        wo, bo = linear(HIDDEN, HIDDEN)
        wi, bi = linear(INTERMEDIATE, HIDDEN)
        wf, bf = linear(HIDDEN, INTERMEDIATE)
        # Q weight pre-scaled by 1/sqrt(HEAD_DIM) and zero-padded to 2H output
        # lanes so the fused score matmul can contract the full [K|V] lane axis.
        wq_l.append(jnp.concatenate([wq.T * scale, zH], axis=1))              # (H, 2H)
        bq_l.append(jnp.concatenate([bq * scale, jnp.zeros((1, HIDDEN), jnp.float32)], axis=1))
        wkv_l.append(jnp.concatenate([wk.T, wv.T], axis=1))                   # (H, 2H)
        bkv_l.append(jnp.concatenate([bk, bv], axis=1))                       # (1, 2H)
        # Output projection consumes only the V half of the context tile.
        wo_l.append(jnp.concatenate([zH, wo.T], axis=0))                      # (2H, H)
        bo_l.append(bo)
        wi_l.append(wi.T)                                                     # (H, I)
        bi_l.append(bi)
        wf_l.append(wf.T)                                                     # (I, H)
        bf_l.append(bf)
        ln_l.append(jnp.concatenate([ones, zeros, ones, zeros], axis=0))      # (4, H)

    out_w, out_b = linear(OUT_DIM, HIDDEN)
    out_w_pad = jnp.zeros((HIDDEN, OUT_PAD), jnp.float32).at[:, :OUT_DIM].set(out_w.T)
    out_b_pad = jnp.zeros((1, OUT_PAD), jnp.float32).at[:, :OUT_DIM].set(out_b)

    # Constant masks for the fused all-head attention.
    row_head = jnp.arange(KV_ROWS) // ROWS
    lane_head = (jnp.arange(2 * HIDDEN) % HIDDEN) // HEAD_DIM
    headmask = (row_head[:, None] == lane_head[None, :]).astype(jnp.bfloat16)    # (KV_ROWS, 2H)
    segsum = (row_head[:, None] == row_head[None, :]).astype(jnp.bfloat16)       # (KV_ROWS, KV_ROWS)

    bf16 = jnp.bfloat16
    return {
        'word_emb': norm((VOCAB, HIDDEN)),
        'pos_emb': norm((MAX_POS, HIDDEN)),
        'type_emb': norm((TYPE_VOCAB, HIDDEN)),
        'emb_ln': jnp.concatenate([ones, zeros], axis=0),                     # (2, H)
        'wq': jnp.stack(wq_l).astype(bf16), 'bq': jnp.stack(bq_l),
        'wkv': jnp.stack(wkv_l).astype(bf16), 'bkv': jnp.stack(bkv_l),
        'wo': jnp.stack(wo_l).astype(bf16), 'bo': jnp.stack(bo_l),
        'wi': jnp.stack(wi_l).astype(bf16), 'bi': jnp.stack(bi_l),
        'wf': jnp.stack(wf_l).astype(bf16), 'bf': jnp.stack(bf_l),
        'ln': jnp.stack(ln_l),
        'headmask': headmask, 'segsum': segsum,
        'out_w_pad': out_w_pad.astype(bf16), 'out_b_pad': out_b_pad,
    }


if __name__ == "__main__":
    key = jax.random.PRNGKey(0)
    pkey, ikey = jax.random.split(key)
    params = init_params(pkey)

    # Synthetic tokenized batch (stands in for tokenizer output).
    input_ids = jax.random.randint(ikey, (BATCH, SEQ), 0, VOCAB, dtype=jnp.int32)
    attention_mask = jnp.array([[1.0] * SEQ,
                                [1.0] * 6 + [0.0] * 2], dtype=jnp.float32)
    token_type_ids = jnp.zeros((BATCH, SEQ), dtype=jnp.int32)

    out = frozen_bert_text_encoder(params, input_ids, attention_mask, token_type_ids)
    out = jax.block_until_ready(out)
    assert out.shape == (BATCH, OUT_DIM) and out.dtype == jnp.float32
    print("KERNEL_OK")
</pallas_src>

<mosaic_0001>
module attributes {stable_mosaic.version = 11 : i64} {
  func.func @fused_encoder_kernel(%arg0: memref<16x32xf32, #tpu.memory_space<vmem>>, %arg1: memref<16x64xf32, #tpu.memory_space<vmem>>, %arg2: memref<64x64xbf16, #tpu.memory_space<vmem>>, %arg3: memref<64x64xbf16, #tpu.memory_space<vmem>>, %arg4: memref<2x32xf32, #tpu.memory_space<vmem>>, %arg5: memref<2x32x64xbf16, #tpu.memory_space<vmem>>, %arg6: memref<2x1x64xf32, #tpu.memory_space<vmem>>, %arg7: memref<2x32x64xbf16, #tpu.memory_space<vmem>>, %arg8: memref<2x1x64xf32, #tpu.memory_space<vmem>>, %arg9: memref<2x64x32xbf16, #tpu.memory_space<vmem>>, %arg10: memref<2x1x32xf32, #tpu.memory_space<vmem>>, %arg11: memref<2x32x64xbf16, #tpu.memory_space<vmem>>, %arg12: memref<2x1x64xf32, #tpu.memory_space<vmem>>, %arg13: memref<2x64x32xbf16, #tpu.memory_space<vmem>>, %arg14: memref<2x1x32xf32, #tpu.memory_space<vmem>>, %arg15: memref<2x4x32xf32, #tpu.memory_space<vmem>>, %arg16: memref<32x128xbf16, #tpu.memory_space<vmem>>, %arg17: memref<1x128xf32, #tpu.memory_space<vmem>>, %arg18: memref<2x128xf32, #tpu.memory_space<vmem>>) attributes {dimension_semantics = [], scalar_prefetch = 0 : i64, scratch_operands = 0 : i64, tpu.core_type = #tpu.core_type<tc>} {
    %c0 = arith.constant 0 : index
    %c0_0 = arith.constant 0 : index
    %0 = vector.load %arg1[%c0, %c0_0] : memref<16x64xf32, #tpu.memory_space<vmem>>, vector<16x64xf32>
    %c0_1 = arith.constant 0 : index
    %c0_2 = arith.constant 0 : index
    %1 = vector.load %arg2[%c0_1, %c0_2] : memref<64x64xbf16, #tpu.memory_space<vmem>>, vector<64x64xbf16>
    %c0_3 = arith.constant 0 : index
    %c0_4 = arith.constant 0 : index
    %2 = vector.load %arg3[%c0_3, %c0_4] : memref<64x64xbf16, #tpu.memory_space<vmem>>, vector<64x64xbf16>
    %c0_5 = arith.constant 0 : index
    %c0_6 = arith.constant 0 : index
    %3 = vector.load %arg4[%c0_5, %c0_6] : memref<2x32xf32, #tpu.memory_space<vmem>>, vector<2x32xf32>
    %c0_7 = arith.constant 0 : index
    %c0_8 = arith.constant 0 : index
    %4 = vector.load %arg0[%c0_7, %c0_8] : memref<16x32xf32, #tpu.memory_space<vmem>>, vector<16x32xf32>
    %5 = vector.extract_strided_slice %3 {offsets = [0, 0], sizes = [1, 32], strides = [1, 1]} : vector<2x32xf32> to vector<1x32xf32>
    %6 = vector.extract_strided_slice %3 {offsets = [1, 0], sizes = [1, 32], strides = [1, 1]} : vector<2x32xf32> to vector<1x32xf32>
    %cst = arith.constant dense<0.000000e+00> : vector<16xf32>
    %7 = vector.multi_reduction <add>, %4, %cst [1] : vector<16x32xf32> to vector<16xf32>
    %8 = vector.shape_cast %7 : vector<16xf32> to vector<16x1xf32>
    %cst_9 = arith.constant 3.200000e+01 : f32
    %9 = vector.broadcast %cst_9 : f32 to vector<16x1xf32>
    %10 = arith.divf %8, %9 : vector<16x1xf32>
    %11 = vector.broadcast %10 : vector<16x1xf32> to vector<16x32xf32>
    %12 = arith.subf %4, %11 : vector<16x32xf32>
    %13 = arith.mulf %12, %12 : vector<16x32xf32>
    %cst_10 = arith.constant dense<0.000000e+00> : vector<16xf32>
    %14 = vector.multi_reduction <add>, %13, %cst_10 [1] : vector<16x32xf32> to vector<16xf32>
    %15 = vector.shape_cast %14 : vector<16xf32> to vector<16x1xf32>
    %cst_11 = arith.constant 3.200000e+01 : f32
    %16 = vector.broadcast %cst_11 : f32 to vector<16x1xf32>
    %17 = arith.divf %15, %16 : vector<16x1xf32>
    %18 = vector.broadcast %10 : vector<16x1xf32> to vector<16x32xf32>
    %19 = arith.subf %4, %18 : vector<16x32xf32>
    %cst_12 = arith.constant 9.99999996E-13 : f32
    %20 = vector.broadcast %cst_12 : f32 to vector<16x1xf32>
    %21 = arith.addf %17, %20 : vector<16x1xf32>
    %22 = math.rsqrt %21 : vector<16x1xf32>
    %23 = vector.broadcast %22 : vector<16x1xf32> to vector<16x32xf32>
    %24 = arith.mulf %19, %23 : vector<16x32xf32>
    %25 = vector.broadcast %5 : vector<1x32xf32> to vector<16x32xf32>
    %26 = arith.mulf %24, %25 : vector<16x32xf32>
    %27 = vector.broadcast %6 : vector<1x32xf32> to vector<16x32xf32>
    %28 = arith.addf %26, %27 : vector<16x32xf32>
    %c0_13 = arith.constant 0 : index
    %c0_14 = arith.constant 0 : index
    %c0_15 = arith.constant 0 : index
    %29 = vector.load %arg15[%c0_13, %c0_14, %c0_15] : memref<2x4x32xf32, #tpu.memory_space<vmem>>, vector<1x4x32xf32>
    %30 = vector.shape_cast %29 : vector<1x4x32xf32> to vector<4x32xf32>
    %31 = arith.truncf %28 : vector<16x32xf32> to vector<16x32xbf16>
    %c0_16 = arith.constant 0 : index
    %c0_17 = arith.constant 0 : index
    %c0_18 = arith.constant 0 : index
    %32 = vector.load %arg5[%c0_16, %c0_17, %c0_18] : memref<2x32x64xbf16, #tpu.memory_space<vmem>>, vector<1x32x64xbf16>
    %33 = vector.shape_cast %32 : vector<1x32x64xbf16> to vector<32x64xbf16>
    %cst_19 = arith.constant dense<0.000000e+00> : vector<16x64xf32>
    %34 = tpu.matmul %31, %33, %cst_19 {dimension_numbers = #tpu.dot_dimension_numbers<[1], [0], [0], [1], [0, 0, 1, 1], [], []>} : vector<16x32xbf16>, vector<32x64xbf16>, vector<16x64xf32> -> vector<16x64xf32>
    %c0_20 = arith.constant 0 : index
    %c0_21 = arith.constant 0 : index
    %c0_22 = arith.constant 0 : index
    %35 = vector.load %arg6[%c0_20, %c0_21, %c0_22] : memref<2x1x64xf32, #tpu.memory_space<vmem>>, vector<1x1x64xf32>
    %36 = vector.shape_cast %35 : vector<1x1x64xf32> to vector<1x64xf32>
    %37 = vector.broadcast %36 : vector<1x64xf32> to vector<16x64xf32>
    %38 = arith.addf %34, %37 : vector<16x64xf32>
    %c0_23 = arith.constant 0 : index
    %c0_24 = arith.constant 0 : index
    %c0_25 = arith.constant 0 : index
    %39 = vector.load %arg7[%c0_23, %c0_24, %c0_25] : memref<2x32x64xbf16, #tpu.memory_space<vmem>>, vector<1x32x64xbf16>
    %40 = vector.shape_cast %39 : vector<1x32x64xbf16> to vector<32x64xbf16>
    %cst_26 = arith.constant dense<0.000000e+00> : vector<16x64xf32>
    %41 = tpu.matmul %31, %40, %cst_26 {dimension_numbers = #tpu.dot_dimension_numbers<[1], [0], [0], [1], [0, 0, 1, 1], [], []>} : vector<16x32xbf16>, vector<32x64xbf16>, vector<16x64xf32> -> vector<16x64xf32>
    %c0_27 = arith.constant 0 : index
    %c0_28 = arith.constant 0 : index
    %c0_29 = arith.constant 0 : index
    %42 = vector.load %arg8[%c0_27, %c0_28, %c0_29] : memref<2x1x64xf32, #tpu.memory_space<vmem>>, vector<1x1x64xf32>
    %43 = vector.shape_cast %42 : vector<1x1x64xf32> to vector<1x64xf32>
    %44 = vector.broadcast %43 : vector<1x64xf32> to vector<16x64xf32>
    %45 = arith.addf %41, %44 : vector<16x64xf32>
    %46 = arith.truncf %45 : vector<16x64xf32> to vector<16x64xbf16>
    %47 = tpu.concatenate %46, %46, %46, %46 in 0 : vector<16x64xbf16>, vector<16x64xbf16>, vector<16x64xbf16>, vector<16x64xbf16> -> vector<64x64xbf16>
    %48 = arith.mulf %47, %1 : vector<64x64xbf16>
    %49 = arith.truncf %38 : vector<16x64xf32> to vector<16x64xbf16>
    %cst_30 = arith.constant dense<0.000000e+00> : vector<16x64xf32>
    %50 = tpu.matmul %49, %48, %cst_30 {dimension_numbers = #tpu.dot_dimension_numbers<[1], [1], [0], [0], [0, 0, 1, 0], [], []>} : vector<16x64xbf16>, vector<64x64xbf16>, vector<16x64xf32> -> vector<16x64xf32>
    %51 = arith.addf %50, %0 : vector<16x64xf32>
    %52 = math.exp %51 : vector<16x64xf32>
    %53 = arith.truncf %52 : vector<16x64xf32> to vector<16x64xbf16>
    %cst_31 = arith.constant dense<0.000000e+00> : vector<16x64xf32>
    %54 = tpu.matmul %53, %2, %cst_31 {dimension_numbers = #tpu.dot_dimension_numbers<[1], [0], [0], [1], [0, 0, 1, 1], [], []>} : vector<16x64xbf16>, vector<64x64xbf16>, vector<16x64xf32> -> vector<16x64xf32>
    %55 = tpu.reciprocal %54 {approx = true} : vector<16x64xf32> -> vector<16x64xf32>
    %56 = arith.mulf %52, %55 : vector<16x64xf32>
    %57 = arith.truncf %56 : vector<16x64xf32> to vector<16x64xbf16>
    %cst_32 = arith.constant dense<0.000000e+00> : vector<16x64xf32>
    %58 = tpu.matmul %57, %48, %cst_32 {dimension_numbers = #tpu.dot_dimension_numbers<[1], [0], [0], [1], [0, 0, 1, 1], [], []>} : vector<16x64xbf16>, vector<64x64xbf16>, vector<16x64xf32> -> vector<16x64xf32>
    %59 = arith.truncf %58 : vector<16x64xf32> to vector<16x64xbf16>
    %c0_33 = arith.constant 0 : index
    %c0_34 = arith.constant 0 : index
    %c0_35 = arith.constant 0 : index
    %60 = vector.load %arg9[%c0_33, %c0_34, %c0_35] : memref<2x64x32xbf16, #tpu.memory_space<vmem>>, vector<1x64x32xbf16>
    %61 = vector.shape_cast %60 : vector<1x64x32xbf16> to vector<64x32xbf16>
    %cst_36 = arith.constant dense<0.000000e+00> : vector<16x32xf32>
    %62 = tpu.matmul %59, %61, %cst_36 {dimension_numbers = #tpu.dot_dimension_numbers<[1], [0], [0], [1], [0, 0, 1, 1], [], []>} : vector<16x64xbf16>, vector<64x32xbf16>, vector<16x32xf32> -> vector<16x32xf32>
    %c0_37 = arith.constant 0 : index
    %c0_38 = arith.constant 0 : index
    %c0_39 = arith.constant 0 : index
    %63 = vector.load %arg10[%c0_37, %c0_38, %c0_39] : memref<2x1x32xf32, #tpu.memory_space<vmem>>, vector<1x1x32xf32>
    %64 = vector.shape_cast %63 : vector<1x1x32xf32> to vector<1x32xf32>
    %65 = vector.broadcast %64 : vector<1x32xf32> to vector<16x32xf32>
    %66 = arith.addf %62, %65 : vector<16x32xf32>
    %67 = arith.addf %28, %66 : vector<16x32xf32>
    %68 = vector.extract_strided_slice %30 {offsets = [0, 0], sizes = [1, 32], strides = [1, 1]} : vector<4x32xf32> to vector<1x32xf32>
    %69 = vector.extract_strided_slice %30 {offsets = [1, 0], sizes = [1, 32], strides = [1, 1]} : vector<4x32xf32> to vector<1x32xf32>
    %cst_40 = arith.constant dense<0.000000e+00> : vector<16xf32>
    %70 = vector.multi_reduction <add>, %67, %cst_40 [1] : vector<16x32xf32> to vector<16xf32>
    %71 = vector.shape_cast %70 : vector<16xf32> to vector<16x1xf32>
    %cst_41 = arith.constant 3.200000e+01 : f32
    %72 = vector.broadcast %cst_41 : f32 to vector<16x1xf32>
    %73 = arith.divf %71, %72 : vector<16x1xf32>
    %74 = vector.broadcast %73 : vector<16x1xf32> to vector<16x32xf32>
    %75 = arith.subf %67, %74 : vector<16x32xf32>
    %76 = arith.mulf %75, %75 : vector<16x32xf32>
    %cst_42 = arith.constant dense<0.000000e+00> : vector<16xf32>
    %77 = vector.multi_reduction <add>, %76, %cst_42 [1] : vector<16x32xf32> to vector<16xf32>
    %78 = vector.shape_cast %77 : vector<16xf32> to vector<16x1xf32>
    %cst_43 = arith.constant 3.200000e+01 : f32
    %79 = vector.broadcast %cst_43 : f32 to vector<16x1xf32>
    %80 = arith.divf %78, %79 : vector<16x1xf32>
    %81 = vector.broadcast %73 : vector<16x1xf32> to vector<16x32xf32>
    %82 = arith.subf %67, %81 : vector<16x32xf32>
    %cst_44 = arith.constant 9.99999996E-13 : f32
    %83 = vector.broadcast %cst_44 : f32 to vector<16x1xf32>
    %84 = arith.addf %80, %83 : vector<16x1xf32>
    %85 = math.rsqrt %84 : vector<16x1xf32>
    %86 = vector.broadcast %85 : vector<16x1xf32> to vector<16x32xf32>
    %87 = arith.mulf %82, %86 : vector<16x32xf32>
    %88 = vector.broadcast %68 : vector<1x32xf32> to vector<16x32xf32>
    %89 = arith.mulf %87, %88 : vector<16x32xf32>
    %90 = vector.broadcast %69 : vector<1x32xf32> to vector<16x32xf32>
    %91 = arith.addf %89, %90 : vector<16x32xf32>
    %92 = arith.truncf %91 : vector<16x32xf32> to vector<16x32xbf16>
    %c0_45 = arith.constant 0 : index
    %c0_46 = arith.constant 0 : index
    %c0_47 = arith.constant 0 : index
    %93 = vector.load %arg11[%c0_45, %c0_46, %c0_47] : memref<2x32x64xbf16, #tpu.memory_space<vmem>>, vector<1x32x64xbf16>
    %94 = vector.shape_cast %93 : vector<1x32x64xbf16> to vector<32x64xbf16>
    %cst_48 = arith.constant dense<0.000000e+00> : vector<16x64xf32>
    %95 = tpu.matmul %92, %94, %cst_48 {dimension_numbers = #tpu.dot_dimension_numbers<[1], [0], [0], [1], [0, 0, 1, 1], [], []>} : vector<16x32xbf16>, vector<32x64xbf16>, vector<16x64xf32> -> vector<16x64xf32>
    %c0_49 = arith.constant 0 : index
    %c0_50 = arith.constant 0 : index
    %c0_51 = arith.constant 0 : index
    %96 = vector.load %arg12[%c0_49, %c0_50, %c0_51] : memref<2x1x64xf32, #tpu.memory_space<vmem>>, vector<1x1x64xf32>
    %97 = vector.shape_cast %96 : vector<1x1x64xf32> to vector<1x64xf32>
    %98 = vector.broadcast %97 : vector<1x64xf32> to vector<16x64xf32>
    %99 = arith.addf %95, %98 : vector<16x64xf32>
    %100 = arith.mulf %99, %99 : vector<16x64xf32>
    %101 = arith.mulf %99, %100 : vector<16x64xf32>
    %cst_52 = arith.constant 4.471500e-02 : f32
    %102 = vector.broadcast %cst_52 : f32 to vector<16x64xf32>
    %103 = arith.mulf %102, %101 : vector<16x64xf32>
    %104 = arith.addf %99, %103 : vector<16x64xf32>
    %cst_53 = arith.constant 0.797884583 : f32
    %105 = vector.broadcast %cst_53 : f32 to vector<16x64xf32>
    %106 = arith.mulf %105, %104 : vector<16x64xf32>
    %107 = math.tanh %106 : vector<16x64xf32>
    %cst_54 = arith.constant 1.000000e+00 : f32
    %108 = vector.broadcast %cst_54 : f32 to vector<16x64xf32>
    %109 = arith.addf %108, %107 : vector<16x64xf32>
    %cst_55 = arith.constant 5.000000e-01 : f32
    %110 = vector.broadcast %cst_55 : f32 to vector<16x64xf32>
    %111 = arith.mulf %110, %109 : vector<16x64xf32>
    %112 = arith.mulf %99, %111 : vector<16x64xf32>
    %113 = arith.truncf %112 : vector<16x64xf32> to vector<16x64xbf16>
    %c0_56 = arith.constant 0 : index
    %c0_57 = arith.constant 0 : index
    %c0_58 = arith.constant 0 : index
    %114 = vector.load %arg13[%c0_56, %c0_57, %c0_58] : memref<2x64x32xbf16, #tpu.memory_space<vmem>>, vector<1x64x32xbf16>
    %115 = vector.shape_cast %114 : vector<1x64x32xbf16> to vector<64x32xbf16>
    %cst_59 = arith.constant dense<0.000000e+00> : vector<16x32xf32>
    %116 = tpu.matmul %113, %115, %cst_59 {dimension_numbers = #tpu.dot_dimension_numbers<[1], [0], [0], [1], [0, 0, 1, 1], [], []>} : vector<16x64xbf16>, vector<64x32xbf16>, vector<16x32xf32> -> vector<16x32xf32>
    %c0_60 = arith.constant 0 : index
    %c0_61 = arith.constant 0 : index
    %c0_62 = arith.constant 0 : index
    %117 = vector.load %arg14[%c0_60, %c0_61, %c0_62] : memref<2x1x32xf32, #tpu.memory_space<vmem>>, vector<1x1x32xf32>
    %118 = vector.shape_cast %117 : vector<1x1x32xf32> to vector<1x32xf32>
    %119 = vector.broadcast %118 : vector<1x32xf32> to vector<16x32xf32>
    %120 = arith.addf %116, %119 : vector<16x32xf32>
    %121 = arith.addf %91, %120 : vector<16x32xf32>
    %122 = vector.extract_strided_slice %30 {offsets = [2, 0], sizes = [1, 32], strides = [1, 1]} : vector<4x32xf32> to vector<1x32xf32>
    %123 = vector.extract_strided_slice %30 {offsets = [3, 0], sizes = [1, 32], strides = [1, 1]} : vector<4x32xf32> to vector<1x32xf32>
    %cst_63 = arith.constant dense<0.000000e+00> : vector<16xf32>
    %124 = vector.multi_reduction <add>, %121, %cst_63 [1] : vector<16x32xf32> to vector<16xf32>
    %125 = vector.shape_cast %124 : vector<16xf32> to vector<16x1xf32>
    %cst_64 = arith.constant 3.200000e+01 : f32
    %126 = vector.broadcast %cst_64 : f32 to vector<16x1xf32>
    %127 = arith.divf %125, %126 : vector<16x1xf32>
    %128 = vector.broadcast %127 : vector<16x1xf32> to vector<16x32xf32>
    %129 = arith.subf %121, %128 : vector<16x32xf32>
    %130 = arith.mulf %129, %129 : vector<16x32xf32>
    %cst_65 = arith.constant dense<0.000000e+00> : vector<16xf32>
    %131 = vector.multi_reduction <add>, %130, %cst_65 [1] : vector<16x32xf32> to vector<16xf32>
    %132 = vector.shape_cast %131 : vector<16xf32> to vector<16x1xf32>
    %cst_66 = arith.constant 3.200000e+01 : f32
    %133 = vector.broadcast %cst_66 : f32 to vector<16x1xf32>
    %134 = arith.divf %132, %133 : vector<16x1xf32>
    %135 = vector.broadcast %127 : vector<16x1xf32> to vector<16x32xf32>
    %136 = arith.subf %121, %135 : vector<16x32xf32>
    %cst_67 = arith.constant 9.99999996E-13 : f32
    %137 = vector.broadcast %cst_67 : f32 to vector<16x1xf32>
    %138 = arith.addf %134, %137 : vector<16x1xf32>
    %139 = math.rsqrt %138 : vector<16x1xf32>
    %140 = vector.broadcast %139 : vector<16x1xf32> to vector<16x32xf32>
    %141 = arith.mulf %136, %140 : vector<16x32xf32>
    %142 = vector.broadcast %122 : vector<1x32xf32> to vector<16x32xf32>
    %143 = arith.mulf %141, %142 : vector<16x32xf32>
    %144 = vector.broadcast %123 : vector<1x32xf32> to vector<16x32xf32>
    %145 = arith.addf %143, %144 : vector<16x32xf32>
    %c1 = arith.constant 1 : index
    %c0_68 = arith.constant 0 : index
    %c0_69 = arith.constant 0 : index
    %146 = vector.load %arg15[%c1, %c0_68, %c0_69] : memref<2x4x32xf32, #tpu.memory_space<vmem>>, vector<1x4x32xf32>
    %147 = vector.shape_cast %146 : vector<1x4x32xf32> to vector<4x32xf32>
    %148 = arith.truncf %145 : vector<16x32xf32> to vector<16x32xbf16>
    %c1_70 = arith.constant 1 : index
    %c0_71 = arith.constant 0 : index
    %c0_72 = arith.constant 0 : index
    %149 = vector.load %arg5[%c1_70, %c0_71, %c0_72] : memref<2x32x64xbf16, #tpu.memory_space<vmem>>, vector<1x32x64xbf16>
    %150 = vector.shape_cast %149 : vector<1x32x64xbf16> to vector<32x64xbf16>
    %cst_73 = arith.constant dense<0.000000e+00> : vector<16x64xf32>
    %151 = tpu.matmul %148, %150, %cst_73 {dimension_numbers = #tpu.dot_dimension_numbers<[1], [0], [0], [1], [0, 0, 1, 1], [], []>} : vector<16x32xbf16>, vector<32x64xbf16>, vector<16x64xf32> -> vector<16x64xf32>
    %c1_74 = arith.constant 1 : index
    %c0_75 = arith.constant 0 : index
    %c0_76 = arith.constant 0 : index
    %152 = vector.load %arg6[%c1_74, %c0_75, %c0_76] : memref<2x1x64xf32, #tpu.memory_space<vmem>>, vector<1x1x64xf32>
    %153 = vector.shape_cast %152 : vector<1x1x64xf32> to vector<1x64xf32>
    %154 = vector.broadcast %153 : vector<1x64xf32> to vector<16x64xf32>
    %155 = arith.addf %151, %154 : vector<16x64xf32>
    %c1_77 = arith.constant 1 : index
    %c0_78 = arith.constant 0 : index
    %c0_79 = arith.constant 0 : index
    %156 = vector.load %arg7[%c1_77, %c0_78, %c0_79] : memref<2x32x64xbf16, #tpu.memory_space<vmem>>, vector<1x32x64xbf16>
    %157 = vector.shape_cast %156 : vector<1x32x64xbf16> to vector<32x64xbf16>
    %cst_80 = arith.constant dense<0.000000e+00> : vector<16x64xf32>
    %158 = tpu.matmul %148, %157, %cst_80 {dimension_numbers = #tpu.dot_dimension_numbers<[1], [0], [0], [1], [0, 0, 1, 1], [], []>} : vector<16x32xbf16>, vector<32x64xbf16>, vector<16x64xf32> -> vector<16x64xf32>
    %c1_81 = arith.constant 1 : index
    %c0_82 = arith.constant 0 : index
    %c0_83 = arith.constant 0 : index
    %159 = vector.load %arg8[%c1_81, %c0_82, %c0_83] : memref<2x1x64xf32, #tpu.memory_space<vmem>>, vector<1x1x64xf32>
    %160 = vector.shape_cast %159 : vector<1x1x64xf32> to vector<1x64xf32>
    %161 = vector.broadcast %160 : vector<1x64xf32> to vector<16x64xf32>
    %162 = arith.addf %158, %161 : vector<16x64xf32>
    %163 = arith.truncf %162 : vector<16x64xf32> to vector<16x64xbf16>
    %164 = tpu.concatenate %163, %163, %163, %163 in 0 : vector<16x64xbf16>, vector<16x64xbf16>, vector<16x64xbf16>, vector<16x64xbf16> -> vector<64x64xbf16>
    %165 = arith.mulf %164, %1 : vector<64x64xbf16>
    %166 = arith.truncf %155 : vector<16x64xf32> to vector<16x64xbf16>
    %cst_84 = arith.constant dense<0.000000e+00> : vector<16x64xf32>
    %167 = tpu.matmul %166, %165, %cst_84 {dimension_numbers = #tpu.dot_dimension_numbers<[1], [1], [0], [0], [0, 0, 1, 0], [], []>} : vector<16x64xbf16>, vector<64x64xbf16>, vector<16x64xf32> -> vector<16x64xf32>
    %168 = arith.addf %167, %0 : vector<16x64xf32>
    %169 = math.exp %168 : vector<16x64xf32>
    %170 = arith.truncf %169 : vector<16x64xf32> to vector<16x64xbf16>
    %cst_85 = arith.constant dense<0.000000e+00> : vector<16x64xf32>
    %171 = tpu.matmul %170, %2, %cst_85 {dimension_numbers = #tpu.dot_dimension_numbers<[1], [0], [0], [1], [0, 0, 1, 1], [], []>} : vector<16x64xbf16>, vector<64x64xbf16>, vector<16x64xf32> -> vector<16x64xf32>
    %172 = tpu.reciprocal %171 {approx = true} : vector<16x64xf32> -> vector<16x64xf32>
    %173 = arith.mulf %169, %172 : vector<16x64xf32>
    %174 = arith.truncf %173 : vector<16x64xf32> to vector<16x64xbf16>
    %cst_86 = arith.constant dense<0.000000e+00> : vector<16x64xf32>
    %175 = tpu.matmul %174, %165, %cst_86 {dimension_numbers = #tpu.dot_dimension_numbers<[1], [0], [0], [1], [0, 0, 1, 1], [], []>} : vector<16x64xbf16>, vector<64x64xbf16>, vector<16x64xf32> -> vector<16x64xf32>
    %176 = arith.truncf %175 : vector<16x64xf32> to vector<16x64xbf16>
    %c1_87 = arith.constant 1 : index
    %c0_88 = arith.constant 0 : index
    %c0_89 = arith.constant 0 : index
    %177 = vector.load %arg9[%c1_87, %c0_88, %c0_89] : memref<2x64x32xbf16, #tpu.memory_space<vmem>>, vector<1x64x32xbf16>
    %178 = vector.shape_cast %177 : vector<1x64x32xbf16> to vector<64x32xbf16>
    %cst_90 = arith.constant dense<0.000000e+00> : vector<16x32xf32>
    %179 = tpu.matmul %176, %178, %cst_90 {dimension_numbers = #tpu.dot_dimension_numbers<[1], [0], [0], [1], [0, 0, 1, 1], [], []>} : vector<16x64xbf16>, vector<64x32xbf16>, vector<16x32xf32> -> vector<16x32xf32>
    %c1_91 = arith.constant 1 : index
    %c0_92 = arith.constant 0 : index
    %c0_93 = arith.constant 0 : index
    %180 = vector.load %arg10[%c1_91, %c0_92, %c0_93] : memref<2x1x32xf32, #tpu.memory_space<vmem>>, vector<1x1x32xf32>
    %181 = vector.shape_cast %180 : vector<1x1x32xf32> to vector<1x32xf32>
    %182 = vector.broadcast %181 : vector<1x32xf32> to vector<16x32xf32>
    %183 = arith.addf %179, %182 : vector<16x32xf32>
    %184 = arith.addf %145, %183 : vector<16x32xf32>
    %185 = vector.extract_strided_slice %147 {offsets = [0, 0], sizes = [1, 32], strides = [1, 1]} : vector<4x32xf32> to vector<1x32xf32>
    %186 = vector.extract_strided_slice %147 {offsets = [1, 0], sizes = [1, 32], strides = [1, 1]} : vector<4x32xf32> to vector<1x32xf32>
    %cst_94 = arith.constant dense<0.000000e+00> : vector<16xf32>
    %187 = vector.multi_reduction <add>, %184, %cst_94 [1] : vector<16x32xf32> to vector<16xf32>
    %188 = vector.shape_cast %187 : vector<16xf32> to vector<16x1xf32>
    %cst_95 = arith.constant 3.200000e+01 : f32
    %189 = vector.broadcast %cst_95 : f32 to vector<16x1xf32>
    %190 = arith.divf %188, %189 : vector<16x1xf32>
    %191 = vector.broadcast %190 : vector<16x1xf32> to vector<16x32xf32>
    %192 = arith.subf %184, %191 : vector<16x32xf32>
    %193 = arith.mulf %192, %192 : vector<16x32xf32>
    %cst_96 = arith.constant dense<0.000000e+00> : vector<16xf32>
    %194 = vector.multi_reduction <add>, %193, %cst_96 [1] : vector<16x32xf32> to vector<16xf32>
    %195 = vector.shape_cast %194 : vector<16xf32> to vector<16x1xf32>
    %cst_97 = arith.constant 3.200000e+01 : f32
    %196 = vector.broadcast %cst_97 : f32 to vector<16x1xf32>
    %197 = arith.divf %195, %196 : vector<16x1xf32>
    %198 = vector.broadcast %190 : vector<16x1xf32> to vector<16x32xf32>
    %199 = arith.subf %184, %198 : vector<16x32xf32>
    %cst_98 = arith.constant 9.99999996E-13 : f32
    %200 = vector.broadcast %cst_98 : f32 to vector<16x1xf32>
    %201 = arith.addf %197, %200 : vector<16x1xf32>
    %202 = math.rsqrt %201 : vector<16x1xf32>
    %203 = vector.broadcast %202 : vector<16x1xf32> to vector<16x32xf32>
    %204 = arith.mulf %199, %203 : vector<16x32xf32>
    %205 = vector.broadcast %185 : vector<1x32xf32> to vector<16x32xf32>
    %206 = arith.mulf %204, %205 : vector<16x32xf32>
    %207 = vector.broadcast %186 : vector<1x32xf32> to vector<16x32xf32>
    %208 = arith.addf %206, %207 : vector<16x32xf32>
    %209 = arith.truncf %208 : vector<16x32xf32> to vector<16x32xbf16>
    %c1_99 = arith.constant 1 : index
    %c0_100 = arith.constant 0 : index
    %c0_101 = arith.constant 0 : index
    %210 = vector.load %arg11[%c1_99, %c0_100, %c0_101] : memref<2x32x64xbf16, #tpu.memory_space<vmem>>, vector<1x32x64xbf16>
    %211 = vector.shape_cast %210 : vector<1x32x64xbf16> to vector<32x64xbf16>
    %cst_102 = arith.constant dense<0.000000e+00> : vector<16x64xf32>
    %212 = tpu.matmul %209, %211, %cst_102 {dimension_numbers = #tpu.dot_dimension_numbers<[1], [0], [0], [1], [0, 0, 1, 1], [], []>} : vector<16x32xbf16>, vector<32x64xbf16>, vector<16x64xf32> -> vector<16x64xf32>
    %c1_103 = arith.constant 1 : index
    %c0_104 = arith.constant 0 : index
    %c0_105 = arith.constant 0 : index
    %213 = vector.load %arg12[%c1_103, %c0_104, %c0_105] : memref<2x1x64xf32, #tpu.memory_space<vmem>>, vector<1x1x64xf32>
    %214 = vector.shape_cast %213 : vector<1x1x64xf32> to vector<1x64xf32>
    %215 = vector.broadcast %214 : vector<1x64xf32> to vector<16x64xf32>
    %216 = arith.addf %212, %215 : vector<16x64xf32>
    %217 = arith.mulf %216, %216 : vector<16x64xf32>
    %218 = arith.mulf %216, %217 : vector<16x64xf32>
    %cst_106 = arith.constant 4.471500e-02 : f32
    %219 = vector.broadcast %cst_106 : f32 to vector<16x64xf32>
    %220 = arith.mulf %219, %218 : vector<16x64xf32>
    %221 = arith.addf %216, %220 : vector<16x64xf32>
    %cst_107 = arith.constant 0.797884583 : f32
    %222 = vector.broadcast %cst_107 : f32 to vector<16x64xf32>
    %223 = arith.mulf %222, %221 : vector<16x64xf32>
    %224 = math.tanh %223 : vector<16x64xf32>
    %cst_108 = arith.constant 1.000000e+00 : f32
    %225 = vector.broadcast %cst_108 : f32 to vector<16x64xf32>
    %226 = arith.addf %225, %224 : vector<16x64xf32>
    %cst_109 = arith.constant 5.000000e-01 : f32
    %227 = vector.broadcast %cst_109 : f32 to vector<16x64xf32>
    %228 = arith.mulf %227, %226 : vector<16x64xf32>
    %229 = arith.mulf %216, %228 : vector<16x64xf32>
    %230 = arith.truncf %229 : vector<16x64xf32> to vector<16x64xbf16>
    %c1_110 = arith.constant 1 : index
    %c0_111 = arith.constant 0 : index
    %c0_112 = arith.constant 0 : index
    %231 = vector.load %arg13[%c1_110, %c0_111, %c0_112] : memref<2x64x32xbf16, #tpu.memory_space<vmem>>, vector<1x64x32xbf16>
    %232 = vector.shape_cast %231 : vector<1x64x32xbf16> to vector<64x32xbf16>
    %cst_113 = arith.constant dense<0.000000e+00> : vector<16x32xf32>
    %233 = tpu.matmul %230, %232, %cst_113 {dimension_numbers = #tpu.dot_dimension_numbers<[1], [0], [0], [1], [0, 0, 1, 1], [], []>} : vector<16x64xbf16>, vector<64x32xbf16>, vector<16x32xf32> -> vector<16x32xf32>
    %c1_114 = arith.constant 1 : index
    %c0_115 = arith.constant 0 : index
    %c0_116 = arith.constant 0 : index
    %234 = vector.load %arg14[%c1_114, %c0_115, %c0_116] : memref<2x1x32xf32, #tpu.memory_space<vmem>>, vector<1x1x32xf32>
    %235 = vector.shape_cast %234 : vector<1x1x32xf32> to vector<1x32xf32>
    %236 = vector.broadcast %235 : vector<1x32xf32> to vector<16x32xf32>
    %237 = arith.addf %233, %236 : vector<16x32xf32>
    %238 = arith.addf %208, %237 : vector<16x32xf32>
    %239 = vector.extract_strided_slice %147 {offsets = [2, 0], sizes = [1, 32], strides = [1, 1]} : vector<4x32xf32> to vector<1x32xf32>
    %240 = vector.extract_strided_slice %147 {offsets = [3, 0], sizes = [1, 32], strides = [1, 1]} : vector<4x32xf32> to vector<1x32xf32>
    %cst_117 = arith.constant dense<0.000000e+00> : vector<16xf32>
    %241 = vector.multi_reduction <add>, %238, %cst_117 [1] : vector<16x32xf32> to vector<16xf32>
    %242 = vector.shape_cast %241 : vector<16xf32> to vector<16x1xf32>
    %cst_118 = arith.constant 3.200000e+01 : f32
    %243 = vector.broadcast %cst_118 : f32 to vector<16x1xf32>
    %244 = arith.divf %242, %243 : vector<16x1xf32>
    %245 = vector.broadcast %244 : vector<16x1xf32> to vector<16x32xf32>
    %246 = arith.subf %238, %245 : vector<16x32xf32>
    %247 = arith.mulf %246, %246 : vector<16x32xf32>
    %cst_119 = arith.constant dense<0.000000e+00> : vector<16xf32>
    %248 = vector.multi_reduction <add>, %247, %cst_119 [1] : vector<16x32xf32> to vector<16xf32>
    %249 = vector.shape_cast %248 : vector<16xf32> to vector<16x1xf32>
    %cst_120 = arith.constant 3.200000e+01 : f32
    %250 = vector.broadcast %cst_120 : f32 to vector<16x1xf32>
    %251 = arith.divf %249, %250 : vector<16x1xf32>
    %252 = vector.broadcast %244 : vector<16x1xf32> to vector<16x32xf32>
    %253 = arith.subf %238, %252 : vector<16x32xf32>
    %cst_121 = arith.constant 9.99999996E-13 : f32
    %254 = vector.broadcast %cst_121 : f32 to vector<16x1xf32>
    %255 = arith.addf %251, %254 : vector<16x1xf32>
    %256 = math.rsqrt %255 : vector<16x1xf32>
    %257 = vector.broadcast %256 : vector<16x1xf32> to vector<16x32xf32>
    %258 = arith.mulf %253, %257 : vector<16x32xf32>
    %259 = vector.broadcast %239 : vector<1x32xf32> to vector<16x32xf32>
    %260 = arith.mulf %258, %259 : vector<16x32xf32>
    %261 = vector.broadcast %240 : vector<1x32xf32> to vector<16x32xf32>
    %262 = arith.addf %260, %261 : vector<16x32xf32>
    %263 = vector.extract_strided_slice %262 {offsets = [0, 0], sizes = [1, 32], strides = [1, 1]} : vector<16x32xf32> to vector<1x32xf32>
    %264 = vector.extract_strided_slice %262 {offsets = [8, 0], sizes = [1, 32], strides = [1, 1]} : vector<16x32xf32> to vector<1x32xf32>
    %265 = tpu.concatenate %263, %264 in 0 : vector<1x32xf32>, vector<1x32xf32> -> vector<2x32xf32>
    %266 = arith.truncf %265 : vector<2x32xf32> to vector<2x32xbf16>
    %c0_122 = arith.constant 0 : index
    %c0_123 = arith.constant 0 : index
    %267 = vector.load %arg16[%c0_122, %c0_123] : memref<32x128xbf16, #tpu.memory_space<vmem>>, vector<32x128xbf16>
    %cst_124 = arith.constant dense<0.000000e+00> : vector<2x128xf32>
    %268 = tpu.matmul %266, %267, %cst_124 {dimension_numbers = #tpu.dot_dimension_numbers<[1], [0], [0], [1], [0, 0, 1, 1], [], []>} : vector<2x32xbf16>, vector<32x128xbf16>, vector<2x128xf32> -> vector<2x128xf32>
    %c0_125 = arith.constant 0 : index
    %c0_126 = arith.constant 0 : index
    %269 = vector.load %arg17[%c0_125, %c0_126] : memref<1x128xf32, #tpu.memory_space<vmem>>, vector<1x128xf32>
    %270 = vector.broadcast %269 : vector<1x128xf32> to vector<2x128xf32>
    %271 = arith.addf %268, %270 : vector<2x128xf32>
    %c0_127 = arith.constant 0 : index
    %c0_128 = arith.constant 0 : index
    %272 = vector.load %arg18[%c0_127, %c0_128] : memref<2x128xf32, #tpu.memory_space<vmem>>, vector<2x128xf32>
    tpu.vector_store %arg18[%c0_127, %c0_128], %271 {strides = array<i32>} : memref<2x128xf32, #tpu.memory_space<vmem>>, vector<2x128xf32>,
    return
  }
}

</mosaic_0001>

<llo_original>
// kernel: tpu_custom_call.1
$region0: #{tpu_custom_call.1}
  #allocation0 [shape = 'u32[]', space=smem, size = 0x4, offset = 0x4, fixed_abs, tag = 'smem constant byte address 0x4 - core index']
  #allocation1 [shape = 'u32[72,128]{1,0:T(1,128)}', space=vmem, size = 0x9000, scoped, tag = 'internal scratch']
  %s0 = inlined_call_operand.hbm [shape: f32[16,32], index: 0, kind: input, shape index: {}]
  %s1 = inlined_call_operand.hbm [shape: f32[16,64], index: 1, kind: input, shape index: {}]
  %s2 = inlined_call_operand.vmem [shape: bf16[64,64], index: 2, kind: input, shape index: {}]
  %s3 = inlined_call_operand.vmem [shape: bf16[64,64], index: 3, kind: input, shape index: {}]
  %s4 = inlined_call_operand.hbm [shape: f32[2,32], index: 4, kind: input, shape index: {}]
  %s5 = inlined_call_operand.vmem [shape: bf16[2,32,64], index: 5, kind: input, shape index: {}]
  %s6 = inlined_call_operand.hbm [shape: f32[2,1,64], index: 6, kind: input, shape index: {}]
  %s7 = inlined_call_operand.vmem [shape: bf16[2,32,64], index: 7, kind: input, shape index: {}]
  %s8 = inlined_call_operand.hbm [shape: f32[2,1,64], index: 8, kind: input, shape index: {}]
  %s9 = inlined_call_operand.vmem [shape: bf16[2,64,32], index: 9, kind: input, shape index: {}]
  %s10 = inlined_call_operand.hbm [shape: f32[2,1,32], index: 10, kind: input, shape index: {}]
  %s11 = inlined_call_operand.vmem [shape: bf16[2,32,64], index: 11, kind: input, shape index: {}]
  %s12 = inlined_call_operand.vmem [shape: f32[2,1,64], index: 12, kind: input, shape index: {}]
  %s13 = inlined_call_operand.vmem [shape: bf16[2,64,32], index: 13, kind: input, shape index: {}]
  %s14 = inlined_call_operand.hbm [shape: f32[2,1,32], index: 14, kind: input, shape index: {}]
  %s15 = inlined_call_operand.vmem [shape: f32[2,4,32], index: 15, kind: input, shape index: {}]
  %s16 = inlined_call_operand.hbm [shape: bf16[32,128], index: 16, kind: input, shape index: {}]
  %s17 = inlined_call_operand.vmem [shape: f32[1,128], index: 17, kind: input, shape index: {}]
  %s18 = inlined_call_operand.hbm [shape: f32[2,128], index: 18, kind: output, shape index: {}]
  %s19 = sld [smem:[#allocation0]]
  $region114: #{tpu_custom_call.1} parent=0
    _
  %s21 = ssub.s32 1, %s19
  %s22 = scalar_select 0, %s21, %s19
  $region1: #{tpu_custom_call.1} parent=0
    #allocation2 [shape = 'u8[8192]{0}', space=vmem, size = 0x2000, scoped, tag = 'input window, operand 0, single buffered']
    #allocation3 [shape = 's32[1]{0}', space=sflag, size = 0x4, scoped, tag = 'scoped memory for tpu_custom_call.1']
    #allocation4 [shape = 's32[1]{0}', space=sflag, size = 0x4, scoped, tag = 'scoped memory for tpu_custom_call.1']
    #allocation5 [shape = 'u8[8192]{0}', space=vmem, size = 0x2000, scoped, tag = 'input window, operand 1, single buffered']
    #allocation6 [shape = 's32[1]{0}', space=sflag, size = 0x4, scoped, tag = 'scoped memory for tpu_custom_call.1']
    #allocation7 [shape = 'u8[1024]{0}', space=vmem, size = 0x400, scoped, tag = 'input window, operand 4, single buffered']
    #allocation8 [shape = 'u8[1024]{0}', space=vmem, size = 0x400, scoped, tag = 'input window, operand 6, single buffered']
    #allocation9 [shape = 's32[1]{0}', space=sflag, size = 0x4, scoped, tag = 'scoped memory for tpu_custom_call.1']
    #allocation10 [shape = 'u8[1024]{0}', space=vmem, size = 0x400, scoped, tag = 'input window, operand 8, single buffered']
    #allocation11 [shape = 'u8[1024]{0}', space=vmem, size = 0x400, scoped, tag = 'input window, operand 10, single buffered']
    #allocation12 [shape = 's32[1]{0}', space=sflag, size = 0x4, scoped, tag = 'scoped memory for tpu_custom_call.1']
    #allocation13 [shape = 'u8[1024]{0}', space=vmem, size = 0x400, scoped, tag = 'input window, operand 14, single buffered']
    #allocation14 [shape = 'u8[8192]{0}', space=vmem, size = 0x2000, scoped, tag = 'input window, operand 16, single buffered']
    #allocation15 [shape = 's32[1]{0}', space=sflag, size = 0x4, scoped, tag = 'scoped memory for tpu_custom_call.1']
    #allocation16 [shape = 'u8[1024]{0}', space=vmem, size = 0x400, scoped, tag = 'output window, operand 0, single buffered']
    %23 = vsyncpa [#allocation3], 0
    %24 = vsyncpa [#allocation6], 0
    %25 = vsyncpa [#allocation9], 0
    %26 = vsyncpa [#allocation12], 0
    %27 = vsyncpa [#allocation15], 0
    %28 = vsyncpa [#allocation4], 0
    // Predicated region
    $region2: #{tpu_custom_call.1} parent=1 // pred_check
      _
    $region3: #{tpu_custom_call.1} parent=1 // pred_check_branch
      %30 = sbr.rel (0) target = $region5
    $region4: #{tpu_custom_call.1} parent=1 // pred_region
      %32 = vsyncadd [#allocation3], 0
      %s33 = sshll.u32 %s0, 4
      %s34 = int_to_ptr.hbm [resolvable:$true] %s33
      %s35 = sshll.u32 [#allocation2], 4
      %s36 = int_to_ptr.vmem [resolvable:$true] %s35
      %41 = dma.hbm_to_vmem [thread:$0]  %s34, 256, %s36, [#allocation3], 128, 128, 8
    $region5: #{tpu_custom_call.1} parent=1 // pred_fallthru
      _
    // Predicated region
    $region6: #{tpu_custom_call.1} parent=1 // pred_check
      _
    $region7: #{tpu_custom_call.1} parent=1 // pred_check_branch
      %43 = sbr.rel (0) target = $region9
    $region8: #{tpu_custom_call.1} parent=1 // pred_region
      %45 = vsyncadd [#allocation6], 0
      %s46 = sshll.u32 %s1, 4
      %s47 = int_to_ptr.hbm [resolvable:$true] %s46
      %s48 = sshll.u32 [#allocation5], 4
      %s49 = int_to_ptr.vmem [resolvable:$true] %s48
      %54 = dma.hbm_to_vmem [thread:$0]  %s47, 256, %s49, [#allocation6], 128, 128, 8
    $region9: #{tpu_custom_call.1} parent=1 // pred_fallthru
      _
    // Predicated region
    $region10: #{tpu_custom_call.1} parent=1 // pred_check
      _
    $region11: #{tpu_custom_call.1} parent=1 // pred_check_branch
      %56 = sbr.rel (0) target = $region13
    $region12: #{tpu_custom_call.1} parent=1 // pred_region
      _
    $region13: #{tpu_custom_call.1} parent=1 // pred_fallthru
      _
    // Predicated region
    $region14: #{tpu_custom_call.1} parent=1 // pred_check
      _
    $region15: #{tpu_custom_call.1} parent=1 // pred_check_branch
      %58 = sbr.rel (0) target = $region17
    $region16: #{tpu_custom_call.1} parent=1 // pred_region
      _
    $region17: #{tpu_custom_call.1} parent=1 // pred_fallthru
      _
    // Predicated region
    $region18: #{tpu_custom_call.1} parent=1 // pred_check
      _
    $region19: #{tpu_custom_call.1} parent=1 // pred_check_branch
      %60 = sbr.rel (0) target = $region21
    $region20: #{tpu_custom_call.1} parent=1 // pred_region
      %62 = vsyncadd [#allocation6], 0
      %s64 = sshll.u32 %s4, 4
      %s65 = int_to_ptr.hbm [resolvable:$true] %s64
      %s66 = sshll.u32 [#allocation7], 4
      %s67 = int_to_ptr.vmem [resolvable:$true] %s66
      %69 = dma.hbm_to_vmem [thread:$0]  %s65, 32, %s67, [#allocation6]
    $region21: #{tpu_custom_call.1} parent=1 // pred_fallthru
      _
    // Predicated region
    $region22: #{tpu_custom_call.1} parent=1 // pred_check
      _
    $region23: #{tpu_custom_call.1} parent=1 // pred_check_branch
      %71 = sbr.rel (0) target = $region25
    $region24: #{tpu_custom_call.1} parent=1 // pred_region
      _
    $region25: #{tpu_custom_call.1} parent=1 // pred_fallthru
      _
    // Predicated region
    $region26: #{tpu_custom_call.1} parent=1 // pred_check
      _
    $region27: #{tpu_custom_call.1} parent=1 // pred_check_branch
      %73 = sbr.rel (0) target = $region29
    $region28: #{tpu_custom_call.1} parent=1 // pred_region
      %75 = vsyncadd [#allocation9], 0
      %s76 = sshll.u32 %s6, 4
      %s77 = int_to_ptr.hbm [resolvable:$true] %s76
      %s78 = sshll.u32 [#allocation8], 4
      %s79 = int_to_ptr.vmem [resolvable:$true] %s78
      %84 = dma.hbm_to_vmem [thread:$0]  %s77, 32, %s79, [#allocation9], 16, 16, 1
    $region29: #{tpu_custom_call.1} parent=1 // pred_fallthru
      _
    // Predicated region
    $region30: #{tpu_custom_call.1} parent=1 // pred_check
      _
    $region31: #{tpu_custom_call.1} parent=1 // pred_check_branch
      %86 = sbr.rel (0) target = $region33
    $region32: #{tpu_custom_call.1} parent=1 // pred_region
      _
    $region33: #{tpu_custom_call.1} parent=1 // pred_fallthru
      _
    // Predicated region
    $region34: #{tpu_custom_call.1} parent=1 // pred_check
      _
    $region35: #{tpu_custom_call.1} parent=1 // pred_check_branch
      %88 = sbr.rel (0) target = $region37
    $region36: #{tpu_custom_call.1} parent=1 // pred_region
      %90 = vsyncadd [#allocation9], 0
      %s91 = sshll.u32 %s8, 4
      %s92 = int_to_ptr.hbm [resolvable:$true] %s91
      %s93 = sshll.u32 [#allocation10], 4
      %s94 = int_to_ptr.vmem [resolvable:$true] %s93
      %99 = dma.hbm_to_vmem [thread:$0]  %s92, 32, %s94, [#allocation9], 16, 16, 1
    $region37: #{tpu_custom_call.1} parent=1 // pred_fallthru
      _
    // Predicated region
    $region38: #{tpu_custom_call.1} parent=1 // pred_check
      _
    $region39: #{tpu_custom_call.1} parent=1 // pred_check_branch
      %101 = sbr.rel (0) target = $region41
    $region40: #{tpu_custom_call.1} parent=1 // pred_region
      _
    $region41: #{tpu_custom_call.1} parent=1 // pred_fallthru
      _
    // Predicated region
    $region42: #{tpu_custom_call.1} parent=1 // pred_check
      _
    $region43: #{tpu_custom_call.1} parent=1 // pred_check_branch
      %103 = sbr.rel (0) target = $region45
    $region44: #{tpu_custom_call.1} parent=1 // pred_region
      %105 = vsyncadd [#allocation12], 0
      %s106 = sshll.u32 %s10, 4
      %s107 = int_to_ptr.hbm [resolvable:$true] %s106
      %s108 = sshll.u32 [#allocation11], 4
      %s109 = int_to_ptr.vmem [resolvable:$true] %s108
      %114 = dma.hbm_to_vmem [thread:$0]  %s107, 32, %s109, [#allocation12], 16, 16, 1
    $region45: #{tpu_custom_call.1} parent=1 // pred_fallthru
      _
    // Predicated region
    $region46: #{tpu_custom_call.1} parent=1 // pred_check
      _
    $region47: #{tpu_custom_call.1} parent=1 // pred_check_branch
      %116 = sbr.rel (0) target = $region49
    $region48: #{tpu_custom_call.1} parent=1 // pred_region
      _
    $region49: #{tpu_custom_call.1} parent=1 // pred_fallthru
      _
    // Predicated region
    $region50: #{tpu_custom_call.1} parent=1 // pred_check
      _
    $region51: #{tpu_custom_call.1} parent=1 // pred_check_branch
      %118 = sbr.rel (0) target = $region53
    $region52: #{tpu_custom_call.1} parent=1 // pred_region
      _
    $region53: #{tpu_custom_call.1} parent=1 // pred_fallthru
      _
    // Predicated region
    $region54: #{tpu_custom_call.1} parent=1 // pred_check
      _
    $region55: #{tpu_custom_call.1} parent=1 // pred_check_branch
      %120 = sbr.rel (0) target = $region57
    $region56: #{tpu_custom_call.1} parent=1 // pred_region
      _
    $region57: #{tpu_custom_call.1} parent=1 // pred_fallthru
      _
    // Predicated region
    $region58: #{tpu_custom_call.1} parent=1 // pred_check
      _
    $region59: #{tpu_custom_call.1} parent=1 // pred_check_branch
      %122 = sbr.rel (0) target = $region61
    $region60: #{tpu_custom_call.1} parent=1 // pred_region
      %124 = vsyncadd [#allocation12], 0
      %s125 = sshll.u32 %s14, 4
      %s126 = int_to_ptr.hbm [resolvable:$true] %s125
      %s127 = sshll.u32 [#allocation13], 4
      %s128 = int_to_ptr.vmem [resolvable:$true] %s127
      %133 = dma.hbm_to_vmem [thread:$0]  %s126, 32, %s128, [#allocation12], 16, 16, 1
    $region61: #{tpu_custom_call.1} parent=1 // pred_fallthru
      _
    // Predicated region
    $region62: #{tpu_custom_call.1} parent=1 // pred_check
      _
    $region63: #{tpu_custom_call.1} parent=1 // pred_check_branch
      %135 = sbr.rel (0) target = $region65
    $region64: #{tpu_custom_call.1} parent=1 // pred_region
      _
    $region65: #{tpu_custom_call.1} parent=1 // pred_fallthru
      _
    // Predicated region
    $region66: #{tpu_custom_call.1} parent=1 // pred_check
      _
    $region67: #{tpu_custom_call.1} parent=1 // pred_check_branch
      %137 = sbr.rel (0) target = $region69
    $region68: #{tpu_custom_call.1} parent=1 // pred_region
      %139 = vsyncadd [#allocation15], 0
      %s140 = sshll.u32 %s16, 4
      %s141 = int_to_ptr.hbm [resolvable:$true] %s140
      %s142 = sshll.u32 [#allocation14], 4
      %s143 = int_to_ptr.vmem [resolvable:$true] %s142
      %148 = dma.hbm_to_vmem [thread:$0]  %s141, 256, %s143, [#allocation15], 64, 64, 4
    $region69: #{tpu_custom_call.1} parent=1 // pred_fallthru
      _
    // Predicated region
    $region70: #{tpu_custom_call.1} parent=1 // pred_check
      _
    $region71: #{tpu_custom_call.1} parent=1 // pred_check_branch
      %150 = sbr.rel (0) target = $region73
    $region72: #{tpu_custom_call.1} parent=1 // pred_region
      _
    $region73: #{tpu_custom_call.1} parent=1 // pred_fallthru
      _
    // Predicated region
    $region74: #{tpu_custom_call.1} parent=1 // pred_check
      _
    $region75: #{tpu_custom_call.1} parent=1 // pred_check_branch
      %152 = sbr.rel (0) target = $region77
    $region76: #{tpu_custom_call.1} parent=1 // pred_region
      %154 = dma.done [#allocation3], 256
    $region77: #{tpu_custom_call.1} parent=1 // pred_fallthru
      _
    // Predicated region
    $region78: #{tpu_custom_call.1} parent=1 // pred_check
      _
    $region79: #{tpu_custom_call.1} parent=1 // pred_check_branch
      %156 = sbr.rel (0) target = $region81
    $region80: #{tpu_custom_call.1} parent=1 // pred_region
      %158 = dma.done [#allocation6], 256
    $region81: #{tpu_custom_call.1} parent=1 // pred_fallthru
      _
    // Predicated region
    $region82: #{tpu_custom_call.1} parent=1 // pred_check
      _
    $region83: #{tpu_custom_call.1} parent=1 // pred_check_branch
      %160 = sbr.rel (0) target = $region85
    $region84: #{tpu_custom_call.1} parent=1 // pred_region
      %162 = dma.done [#allocation6], 32
    $region85: #{tpu_custom_call.1} parent=1 // pred_fallthru
      _
    // Predicated region
    $region86: #{tpu_custom_call.1} parent=1 // pred_check
      _
    $region87: #{tpu_custom_call.1} parent=1 // pred_check_branch
      %164 = sbr.rel (0) target = $region89
    $region88: #{tpu_custom_call.1} parent=1 // pred_region
      %166 = dma.done [#allocation9], 32
    $region89: #{tpu_custom_call.1} parent=1 // pred_fallthru
      _
    // Predicated region
    $region90: #{tpu_custom_call.1} parent=1 // pred_check
      _
    $region91: #{tpu_custom_call.1} parent=1 // pred_check_branch
      %168 = sbr.rel (0) target = $region93
    $region92: #{tpu_custom_call.1} parent=1 // pred_region
      %170 = dma.done [#allocation9], 32
    $region93: #{tpu_custom_call.1} parent=1 // pred_fallthru
      _
    // Predicated region
    $region94: #{tpu_custom_call.1} parent=1 // pred_check
      _
    $region95: #{tpu_custom_call.1} parent=1 // pred_check_branch
      %172 = sbr.rel (0) target = $region97
    $region96: #{tpu_custom_call.1} parent=1 // pred_region
      %174 = dma.done [#allocation12], 32
    $region97: #{tpu_custom_call.1} parent=1 // pred_fallthru
      _
    // Predicated region
    $region98: #{tpu_custom_call.1} parent=1 // pred_check
      _
    $region99: #{tpu_custom_call.1} parent=1 // pred_check_branch
      %176 = sbr.rel (0) target = $region101
    $region100: #{tpu_custom_call.1} parent=1 // pred_region
      %178 = dma.done [#allocation12], 32
    $region101: #{tpu_custom_call.1} parent=1 // pred_fallthru
      _
    // Predicated region
    $region102: #{tpu_custom_call.1} parent=1 // pred_check
      _
    $region103: #{tpu_custom_call.1} parent=1 // pred_check_branch
      %180 = sbr.rel (0) target = $region105
    $region104: #{tpu_custom_call.1} parent=1 // pred_region
      %182 = dma.done [#allocation15], 256
    $region105: #{tpu_custom_call.1} parent=1 // pred_fallthru
      _
    %v184 = vld [vmem:[#allocation5] sm:$0xff]
    %v185 = vld [vmem:[#allocation5 + $0x8] sm:$0xff]
    %v186 = vld [vmem:[%s2] sm:$0xf]
    %v187 = vld [vmem:[%s2 + $0x4] sm:$0xf]
    %v188 = vld [vmem:[%s2 + $0x8] sm:$0xf]
    %v189 = vld [vmem:[%s2 + $0xc] sm:$0xf]
    %v190 = vld [vmem:[%s2 + $0x10] sm:$0xf]
    %v191 = vld [vmem:[%s2 + $0x14] sm:$0xf]
    %v192 = vld [vmem:[%s2 + $0x18] sm:$0xf]
    %v193 = vld [vmem:[%s2 + $0x1c] sm:$0xf]
    %v194 = vld [vmem:[%s3] sm:$0xf]
    %v195 = vld [vmem:[%s3 + $0x4] sm:$0xf]
    %v196 = vld [vmem:[%s3 + $0x8] sm:$0xf]
    %v197 = vld [vmem:[%s3 + $0xc] sm:$0xf]
    %v198 = vld [vmem:[%s3 + $0x10] sm:$0xf]
    %v199 = vld [vmem:[%s3 + $0x14] sm:$0xf]
    %v200 = vld [vmem:[%s3 + $0x18] sm:$0xf]
    %v201 = vld [vmem:[%s3 + $0x1c] sm:$0xf]
    %v202 = vld [vmem:[#allocation7] sm:$0x3]
    %v203 = vld [vmem:[#allocation2] sm:$0xff]
    %v204 = vld [vmem:[#allocation2 + $0x8] sm:$0xff]
    %vm205 = vcmask 261120
    %v206 = vsel %vm205, %v203, 0.0
    %207 = vadd.xlane.f32.xlu0 %v206
    %v208 = vpop.xlane.xlu0 %207
    %v209 = vsel %vm205, %v204, 0.0
    %210 = vadd.xlane.f32.xlu0 %v209
    %v211 = vpop.xlane.xlu0 %210
    %v212 = vrcp.pop 32.0
    %v213 = vmul.f32 32.0, %v212
    %v214 = vsub.f32 1.0, %v213
    %v215 = vmul.f32 %v212, %v214
    %v216 = vadd.f32 %v212, %v215
    %vm217 = vweird.f32 %v212
    %v218 = vsel %vm217, %v212, %v216
    %v219 = vmul.f32 %v208, %v218
    %v220 = vmul.f32 %v211, %v218
    %v221 = vsub.f32 %v203, %v219
    %v222 = vsub.f32 %v204, %v220
    %v223 = vmul.f32 %v221, %v221
    %v224 = vmul.f32 %v222, %v222
    %v225 = vsel %vm205, %v223, 0.0
    %226 = vadd.xlane.f32.xlu0 %v225
    %v227 = vpop.xlane.xlu0 %226
    %v228 = vsel %vm205, %v224, 0.0
    %229 = vadd.xlane.f32.xlu0 %v228
    %v230 = vpop.xlane.xlu0 %229
    %v231 = vmul.f32 %v227, %v218
    %v232 = vmul.f32 %v230, %v218
    %v233 = vadd.f32 %v231, 1e-12
    %v234 = vadd.f32 %v232, 1e-12
    %v235 = vrsqrt.pop %v233
    %v236 = vmul.f32 %v235, %v233
    %v237 = vmul.f32 %v236, %v235
    %v238 = vmul.f32 0.5, %v237
    %v239 = vsub.f32 1.5, %v238
    %v240 = vmul.f32 %v235, %v239
    %vm241 = vweird.f32 %v233
    %vm242 = vweird.f32 %v235
    %vm243 = vmor %vm241, %vm242
    %v244 = vsel %vm243, %v235, %v240
    %v245 = vrsqrt.pop %v234
    %v246 = vmul.f32 %v245, %v234
    %v247 = vmul.f32 %v246, %v245
    %v248 = vmul.f32 0.5, %v247
    %v249 = vsub.f32 1.5, %v248
    %v250 = vmul.f32 %v245, %v249
    %vm251 = vweird.f32 %v234
    %vm252 = vweird.f32 %v245
    %vm253 = vmor %vm251, %vm252
    %v254 = vsel %vm253, %v245, %v250
    %v255 = vmul.f32 %v221, %v244
    %v256 = vmul.f32 %v222, %v254
    %v257 = vperm.slane %v202, 0
    %v258 = vmul.f32 %v255, %v257
    %v259 = vmul.f32 %v256, %v257
    %v260 = vperm.slane %v202, 1
    %v261 = vadd.f32 %v258, %v260
    %v262 = vadd.f32 %v259, %v260
    %v263 = vld [vmem:[%s15] sm:$0xf]
    %v264 = vpack.c.bf16 %v262, %v261
    %v265 = vld [vmem:[%s5] sm:$0xf]
    %v266 = vld [vmem:[%s5 + $0x4] sm:$0xf]
    %v267 = vld [vmem:[%s5 + $0x8] sm:$0xf]
    %v268 = vld [vmem:[%s5 + $0xc] sm:$0xf]
    %v269 = vld [vmem:[#allocation8] sm:$0x1]
    %v271 = vperm.slane %v269, 0
    %v277 = vunpack.c.l.b16 %v265
    %v278 = vunpack.c.l.b16 %v266
    %v279 = vunpack.c.l.b16 %v267
    %v280 = vunpack.c.l.b16 %v268
    %v281 = vpack.c.b16 %v278, %v277
    %v282 = vpack.c.b16 %v280, %v279
    %v286 = vsel %vm205, %v264, 0
    %288 = vmatpush.bf16.msra.mxu0 0
    %289 = vmatpush.bf16.msra.mxu0 0
    %290 = vmatpush.bf16.msra.mxu0 0
    %291 = vmatpush.bf16.msra.mxu0 0
    %292 = vmatpush.bf16.msra.mxu0 0
    %293 = vmatpush.bf16.msra.mxu0 0
    %294 = vmatpush.bf16.msra.mxu0 %v282
    %295 = vmatpush.bf16.msra.mxu0 %v281
    %296 = vmatmul.bf16.gmra.mxu0 %v286
    %v297 = vpop.f32.mrf.mxu0
    %v298 = vadd.f32 %v271, %v297
    %v299 = vpop.f32.mrf.mxu0
    %v300 = vadd.f32 %v271, %v299
    %301 = vdwg.mxu0
    %v302 = vld [vmem:[%s7] sm:$0xf]
    %v303 = vld [vmem:[%s7 + $0x4] sm:$0xf]
    %v304 = vld [vmem:[%s7 + $0x8] sm:$0xf]
    %v305 = vld [vmem:[%s7 + $0xc] sm:$0xf]
    %v306 = vld [vmem:[#allocation10] sm:$0x1]
    %v308 = vperm.slane %v306, 0
    %v314 = vunpack.c.l.b16 %v302
    %v315 = vunpack.c.l.b16 %v303
    %v316 = vunpack.c.l.b16 %v304
    %v317 = vunpack.c.l.b16 %v305
    %v318 = vpack.c.b16 %v315, %v314
    %v319 = vpack.c.b16 %v317, %v316
    %322 = vmatpush.bf16.msra.mxu0 0
    %323 = vmatpush.bf16.msra.mxu0 0
    %324 = vmatpush.bf16.msra.mxu0 0
    %325 = vmatpush.bf16.msra.mxu0 0
    %326 = vmatpush.bf16.msra.mxu0 0
    %327 = vmatpush.bf16.msra.mxu0 0
    %328 = vmatpush.bf16.msra.mxu0 %v319
    %329 = vmatpush.bf16.msra.mxu0 %v318
    %330 = vmatmul.bf16.gmra.mxu0 %v286
    %v331 = vpop.f32.mrf.mxu0
    %v332 = vadd.f32 %v308, %v331
    %v333 = vpop.f32.mrf.mxu0
    %v334 = vadd.f32 %v308, %v333
    %335 = vdwg.mxu0
    %v336 = vpack.c.bf16 %v332, %v332
    %v337 = vpack.c.bf16 %v334, %v334
    %v340 = vunpack.c.l.b16 %v336
    %v341 = vunpack.c.l.b16 %v337
    %v342 = vpack.c.b16 %v341, %v340
    %v344 = vunpack.c.l.bf16 %v342
    %v345 = vunpack.c.h.bf16 %v342
    %v346 = vunpack.c.l.bf16 %v186
    %v347 = vunpack.c.l.bf16 %v187
    %v348 = vunpack.c.l.bf16 %v188
    %v349 = vunpack.c.l.bf16 %v189
    %v350 = vunpack.c.l.bf16 %v190
    %v351 = vunpack.c.l.bf16 %v191
    %v352 = vunpack.c.l.bf16 %v192
    %v353 = vunpack.c.l.bf16 %v193
    %v354 = vmul.f32 %v344, %v346
    %v355 = vmul.f32 %v345, %v347
    %v356 = vmul.f32 %v344, %v348
    %v357 = vmul.f32 %v345, %v349
    %v358 = vmul.f32 %v344, %v350
    %v359 = vmul.f32 %v345, %v351
    %v360 = vmul.f32 %v344, %v352
    %v361 = vmul.f32 %v345, %v353
    %v362 = vpack.c.bf16 %v355, %v354
    %v363 = vpack.c.bf16 %v357, %v356
    %v364 = vpack.c.bf16 %v359, %v358
    %v365 = vpack.c.bf16 %v361, %v360
    %v366 = vpack.c.bf16 %v300, %v298
    %vm367 = vcmask 523264
    %v369 = vsel %vm367, %v366, 0
    %v372 = vsel %vm367, %v362, 0
    %v375 = vsel %vm367, %v363, 0
    %v378 = vsel %vm367, %v364, 0
    %v381 = vsel %vm367, %v365, 0
    %383 = vmatpush.bf16.xpose.msra.mxu0 0
    %384 = vmatpush.bf16.xpose.msra.mxu0 0
    %385 = vmatpush.bf16.xpose.msra.mxu0 0
    %386 = vmatpush.bf16.xpose.msra.mxu0 0
    %387 = vmatpush.bf16.xpose.msra.mxu0 %v381
    %388 = vmatpush.bf16.xpose.msra.mxu0 %v378
    %389 = vmatpush.bf16.xpose.msra.mxu0 %v375
    %390 = vmatpush.bf16.xpose.msra.mxu0 %v372
    %391 = vmatmul.bf16.gmra.mxu0 %v369
    %v392 = vpop.f32.mrf.mxu0
    %v393 = vadd.f32 %v184, %v392
    %v394 = vpop.f32.mrf.mxu0
    %v395 = vadd.f32 %v185, %v394
    %396 = vdwg.mxu0
    %v397 = vmul.f32 %v393, 1.442695
    %v398 = vpow.pop %v397
    %v399 = vmul.f32 %v395, 1.442695
    %v400 = vpow.pop %v399
    %v401 = vpack.c.bf16 %v400, %v398
    %v410 = vunpack.c.l.b16 %v194
    %v411 = vunpack.c.l.b16 %v195
    %v412 = vunpack.c.l.b16 %v196
    %v413 = vunpack.c.l.b16 %v197
    %v414 = vunpack.c.l.b16 %v198
    %v415 = vunpack.c.l.b16 %v199
    %v416 = vunpack.c.l.b16 %v200
    %v417 = vunpack.c.l.b16 %v201
    %v418 = vpack.c.b16 %v411, %v410
    %v419 = vpack.c.b16 %v413, %v412
    %v420 = vpack.c.b16 %v415, %v414
    %v421 = vpack.c.b16 %v417, %v416
    %v427 = vsel %vm367, %v401, 0
    %429 = vmatpush.bf16.msra.mxu0 0
    %430 = vmatpush.bf16.msra.mxu0 0
    %431 = vmatpush.bf16.msra.mxu0 0
    %432 = vmatpush.bf16.msra.mxu0 0
    %433 = vmatpush.bf16.msra.mxu0 %v421
    %434 = vmatpush.bf16.msra.mxu0 %v420
    %435 = vmatpush.bf16.msra.mxu0 %v419
    %436 = vmatpush.bf16.msra.mxu0 %v418
    %437 = vmatmul.bf16.gmra.mxu0 %v427
    %v438 = vpop.f32.mrf.mxu0
    %v439 = vadd.f32 0.0, %v438
    %v440 = vpop.f32.mrf.mxu0
    %v441 = vadd.f32 0.0, %v440
    %442 = vdwg.mxu0
    %v443 = vrcp.pop %v439
    %v444 = vrcp.pop %v441
    %v445 = vmul.f32 %v398, %v443
    %v446 = vmul.f32 %v400, %v444
    %v447 = vpack.c.bf16 %v446, %v445
    %v449 = vsel %vm367, %v447, 0
    %451 = vmatpush.bf16.msra.mxu0 0
    %452 = vmatpush.bf16.msra.mxu0 0
    %453 = vmatpush.bf16.msra.mxu0 0
    %454 = vmatpush.bf16.msra.mxu0 0
    %455 = vmatpush.bf16.msra.mxu0 %v365
    %456 = vmatpush.bf16.msra.mxu0 %v364
    %457 = vmatpush.bf16.msra.mxu0 %v363
    %458 = vmatpush.bf16.msra.mxu0 %v362
    %459 = vmatmul.bf16.gmra.mxu0 %v449
    %v460 = vpop.f32.mrf.mxu0
    %v461 = vadd.f32 0.0, %v460
    %v462 = vpop.f32.mrf.mxu0
    %v463 = vadd.f32 0.0, %v462
    %464 = vdwg.mxu0
    %v465 = vpack.c.bf16 %v463, %v461
    %v466 = vld [vmem:[%s9] sm:$0xf]
    %v467 = vld [vmem:[%s9 + $0x4] sm:$0xf]
    %v468 = vld [vmem:[%s9 + $0x8] sm:$0xf]
    %v469 = vld [vmem:[%s9 + $0xc] sm:$0xf]
    %v470 = vld [vmem:[%s9 + $0x10] sm:$0xf]
    %v471 = vld [vmem:[%s9 + $0x14] sm:$0xf]
    %v472 = vld [vmem:[%s9 + $0x18] sm:$0xf]
    %v473 = vld [vmem:[%s9 + $0x1c] sm:$0xf]
    %v474 = vld [vmem:[#allocation11] sm:$0x1]
    %v476 = vperm.slane %v474, 0
    %v486 = vunpack.c.l.b16 %v466
    %v487 = vunpack.c.l.b16 %v467
    %v488 = vunpack.c.l.b16 %v468
    %v489 = vunpack.c.l.b16 %v469
    %v490 = vunpack.c.l.b16 %v470
    %v491 = vunpack.c.l.b16 %v471
    %v492 = vunpack.c.l.b16 %v472
    %v493 = vunpack.c.l.b16 %v473
    %v494 = vpack.c.b16 %v487, %v486
    %v495 = vpack.c.b16 %v489, %v488
    %v496 = vpack.c.b16 %v491, %v490
    %v497 = vpack.c.b16 %v493, %v492
    %v503 = vsel %vm367, %v465, 0
    %505 = vmatpush.bf16.msra.mxu0 0
    %506 = vmatpush.bf16.msra.mxu0 0
    %507 = vmatpush.bf16.msra.mxu0 0
    %508 = vmatpush.bf16.msra.mxu0 0
    %509 = vmatpush.bf16.msra.mxu0 %v497
    %510 = vmatpush.bf16.msra.mxu0 %v496
    %511 = vmatpush.bf16.msra.mxu0 %v495
    %512 = vmatpush.bf16.msra.mxu0 %v494
    %513 = vmatmul.bf16.gmra.mxu0 %v503
    %v514 = vpop.f32.mrf.mxu0
    %v515 = vadd.f32 %v476, %v514
    %v516 = vpop.f32.mrf.mxu0
    %v517 = vadd.f32 %v476, %v516
    %518 = vdwg.mxu0
    %v519 = vadd.f32 %v261, %v515
    %v520 = vadd.f32 %v262, %v517
    %v521 = vsel %vm205, %v519, 0.0
    %522 = vadd.xlane.f32.xlu0 %v521
    %v523 = vpop.xlane.xlu0 %522
    %v524 = vsel %vm205, %v520, 0.0
    %525 = vadd.xlane.f32.xlu0 %v524
    %v526 = vpop.xlane.xlu0 %525
    %v527 = vmul.f32 %v523, %v218
    %v528 = vmul.f32 %v526, %v218
    %v529 = vsub.f32 %v519, %v527
    %v530 = vsub.f32 %v520, %v528
    %v531 = vmul.f32 %v529, %v529
    %v532 = vmul.f32 %v530, %v530
    %v533 = vsel %vm205, %v531, 0.0
    %534 = vadd.xlane.f32.xlu0 %v533
    %v535 = vpop.xlane.xlu0 %534
    %v536 = vsel %vm205, %v532, 0.0
    %537 = vadd.xlane.f32.xlu0 %v536
    %v538 = vpop.xlane.xlu0 %537
    %v539 = vmul.f32 %v535, %v218
    %v540 = vmul.f32 %v538, %v218
    %v541 = vadd.f32 %v539, 1e-12
    %v542 = vadd.f32 %v540, 1e-12
    %v543 = vrsqrt.pop %v541
    %v544 = vmul.f32 %v543, %v541
    %v545 = vmul.f32 %v544, %v543
    %v546 = vmul.f32 0.5, %v545
    %v547 = vsub.f32 1.5, %v546
    %v548 = vmul.f32 %v543, %v547
    %vm549 = vweird.f32 %v541
    %vm550 = vweird.f32 %v543
    %vm551 = vmor %vm549, %vm550
    %v552 = vsel %vm551, %v543, %v548
    %v553 = vrsqrt.pop %v542
    %v554 = vmul.f32 %v553, %v542
    %v555 = vmul.f32 %v554, %v553
    %v556 = vmul.f32 0.5, %v555
    %v557 = vsub.f32 1.5, %v556
    %v558 = vmul.f32 %v553, %v557
    %vm559 = vweird.f32 %v542
    %vm560 = vweird.f32 %v553
    %vm561 = vmor %vm559, %vm560
    %v562 = vsel %vm561, %v553, %v558
    %v563 = vmul.f32 %v529, %v552
    %v564 = vmul.f32 %v530, %v562
    %v565 = vperm.slane %v263, 0
    %v566 = vmul.f32 %v563, %v565
    %v567 = vmul.f32 %v564, %v565
    %v568 = vperm.slane %v263, 1
    %v569 = vadd.f32 %v566, %v568
    %v570 = vadd.f32 %v567, %v568
    %v571 = vpack.c.bf16 %v570, %v569
    %v572 = vld [vmem:[%s11] sm:$0xf]
    %v573 = vld [vmem:[%s11 + $0x4] sm:$0xf]
    %v574 = vld [vmem:[%s11 + $0x8] sm:$0xf]
    %v575 = vld [vmem:[%s11 + $0xc] sm:$0xf]
    %v576 = vld [vmem:[%s12] sm:$0x1]
    %v578 = vperm.slane %v576, 0
    %v584 = vunpack.c.l.b16 %v572
    %v585 = vunpack.c.l.b16 %v573
    %v586 = vunpack.c.l.b16 %v574
    %v587 = vunpack.c.l.b16 %v575
    %v588 = vpack.c.b16 %v585, %v584
    %v589 = vpack.c.b16 %v587, %v586
    %v593 = vsel %vm205, %v571, 0
    %595 = vmatpush.bf16.msra.mxu0 0
    %596 = vmatpush.bf16.msra.mxu0 0
    %597 = vmatpush.bf16.msra.mxu0 0
    %598 = vmatpush.bf16.msra.mxu0 0
    %599 = vmatpush.bf16.msra.mxu0 0
    %600 = vmatpush.bf16.msra.mxu0 0
    %601 = vmatpush.bf16.msra.mxu0 %v589
    %602 = vmatpush.bf16.msra.mxu0 %v588
    %603 = vmatmul.bf16.gmra.mxu0 %v593
    %v604 = vpop.f32.mrf.mxu0
    %v605 = vadd.f32 %v578, %v604
    %v606 = vpop.f32.mrf.mxu0
    %v607 = vadd.f32 %v578, %v606
    %608 = vdwg.mxu0
    %v609 = vmul.f32 %v605, %v605
    %v610 = vmul.f32 %v607, %v607
    %v611 = vmul.f32 %v605, %v609
    %v612 = vmul.f32 %v607, %v610
    %v613 = vmul.f32 %v611, 0.044715
    %v614 = vmul.f32 %v612, 0.044715
    %v615 = vadd.f32 %v605, %v613
    %v616 = vadd.f32 %v607, %v614
    %v617 = vmul.f32 %v615, 0.7978846
    %v618 = vmul.f32 %v616, 0.7978846
    %v619 = vtanh.pop %v617
    %v620 = vtanh.pop %v618
    %v621 = vadd.f32 %v619, 1.0
    %v622 = vadd.f32 %v620, 1.0
    %v623 = vmul.f32 %v621, 0.5
    %v624 = vmul.f32 %v622, 0.5
    %v625 = vmul.f32 %v605, %v623
    %v626 = vmul.f32 %v607, %v624
    %v627 = vpack.c.bf16 %v626, %v625
    %v628 = vld [vmem:[%s13] sm:$0xf]
    %v629 = vld [vmem:[%s13 + $0x4] sm:$0xf]
    %v630 = vld [vmem:[%s13 + $0x8] sm:$0xf]
    %v631 = vld [vmem:[%s13 + $0xc] sm:$0xf]
    %v632 = vld [vmem:[%s13 + $0x10] sm:$0xf]
    %v633 = vld [vmem:[%s13 + $0x14] sm:$0xf]
    %v634 = vld [vmem:[%s13 + $0x18] sm:$0xf]
    %v635 = vld [vmem:[%s13 + $0x1c] sm:$0xf]
    %v636 = vld [vmem:[#allocation13] sm:$0x1]
    %v638 = vperm.slane %v636, 0
    %v648 = vunpack.c.l.b16 %v628
    %v649 = vunpack.c.l.b16 %v629
    %v650 = vunpack.c.l.b16 %v630
    %v651 = vunpack.c.l.b16 %v631
    %v652 = vunpack.c.l.b16 %v632
    %v653 = vunpack.c.l.b16 %v633
    %v654 = vunpack.c.l.b16 %v634
    %v655 = vunpack.c.l.b16 %v635
    %v656 = vpack.c.b16 %v649, %v648
    %v657 = vpack.c.b16 %v651, %v650
    %v658 = vpack.c.b16 %v653, %v652
    %v659 = vpack.c.b16 %v655, %v654
    %v665 = vsel %vm367, %v627, 0
    %667 = vmatpush.bf16.msra.mxu0 0
    %668 = vmatpush.bf16.msra.mxu0 0
    %669 = vmatpush.bf16.msra.mxu0 0
    %670 = vmatpush.bf16.msra.mxu0 0
    %671 = vmatpush.bf16.msra.mxu0 %v659
    %672 = vmatpush.bf16.msra.mxu0 %v658
    %673 = vmatpush.bf16.msra.mxu0 %v657
    %674 = vmatpush.bf16.msra.mxu0 %v656
    %675 = vmatmul.bf16.gmra.mxu0 %v665
    %v676 = vpop.f32.mrf.mxu0
    %v677 = vadd.f32 %v638, %v676
    %v678 = vpop.f32.mrf.mxu0
    %v679 = vadd.f32 %v638, %v678
    %680 = vdwg.mxu0
    %v681 = vadd.f32 %v569, %v677
    %v682 = vadd.f32 %v570, %v679
    %v683 = vsel %vm205, %v681, 0.0
    %684 = vadd.xlane.f32.xlu0 %v683
    %v685 = vpop.xlane.xlu0 %684
    %v686 = vsel %vm205, %v682, 0.0
    %687 = vadd.xlane.f32.xlu0 %v686
    %v688 = vpop.xlane.xlu0 %687
    %v689 = vmul.f32 %v685, %v218
    %v690 = vmul.f32 %v688, %v218
    %v691 = vsub.f32 %v681, %v689
    %v692 = vsub.f32 %v682, %v690
    %v693 = vmul.f32 %v691, %v691
    %v694 = vmul.f32 %v692, %v692
    %v695 = vsel %vm205, %v693, 0.0
    %696 = vadd.xlane.f32.xlu0 %v695
    %v697 = vpop.xlane.xlu0 %696
    %v698 = vsel %vm205, %v694, 0.0
    %699 = vadd.xlane.f32.xlu0 %v698
    %v700 = vpop.xlane.xlu0 %699
    %v701 = vmul.f32 %v697, %v218
    %v702 = vmul.f32 %v700, %v218
    %v703 = vadd.f32 %v701, 1e-12
    %v704 = vadd.f32 %v702, 1e-12
    %v705 = vrsqrt.pop %v703
    %v706 = vmul.f32 %v705, %v703
    %v707 = vmul.f32 %v706, %v705
    %v708 = vmul.f32 0.5, %v707
    %v709 = vsub.f32 1.5, %v708
    %v710 = vmul.f32 %v705, %v709
    %vm711 = vweird.f32 %v703
    %vm712 = vweird.f32 %v705
    %vm713 = vmor %vm711, %vm712
    %v714 = vsel %vm713, %v705, %v710
    %v715 = vrsqrt.pop %v704
    %v716 = vmul.f32 %v715, %v704
    %v717 = vmul.f32 %v716, %v715
    %v718 = vmul.f32 0.5, %v717
    %v719 = vsub.f32 1.5, %v718
    %v720 = vmul.f32 %v715, %v719
    %vm721 = vweird.f32 %v704
    %vm722 = vweird.f32 %v715
    %vm723 = vmor %vm721, %vm722
    %v724 = vsel %vm723, %v715, %v720
    %v725 = vmul.f32 %v691, %v714
    %v726 = vmul.f32 %v692, %v724
    %v727 = vperm.slane %v263, 2
    %v728 = vmul.f32 %v725, %v727
    %v729 = vmul.f32 %v726, %v727
    %v730 = vperm.slane %v263, 3
    %v731 = vadd.f32 %v728, %v730
    %v732 = vadd.f32 %v729, %v730
    %s733 = scalar_lea.vmem %s15, 4
    %v734 = vld [vmem:[%s733] sm:$0xf]
    %v735 = vpack.c.bf16 %v732, %v731
    %s736 = scalar_lea.vmem %s5, 16
    %v737 = vld [vmem:[%s736] sm:$0xf]
    %v738 = vld [vmem:[%s736 + $0x4] sm:$0xf]
    %v739 = vld [vmem:[%s736 + $0x8] sm:$0xf]
    %v740 = vld [vmem:[%s736 + $0xc] sm:$0xf]
    %s741 = scalar_lea.vmem [#allocation8], 1
    %v742 = vld [vmem:[%s741] sm:$0x1]
    %v744 = vperm.slane %v742, 0
    %v750 = vunpack.c.l.b16 %v737
    %v751 = vunpack.c.l.b16 %v738
    %v752 = vunpack.c.l.b16 %v739
    %v753 = vunpack.c.l.b16 %v740
    %v754 = vpack.c.b16 %v751, %v750
    %v755 = vpack.c.b16 %v753, %v752
    %v759 = vsel %vm205, %v735, 0
    %761 = vmatpush.bf16.msra.mxu0 0
    %762 = vmatpush.bf16.msra.mxu0 0
    %763 = vmatpush.bf16.msra.mxu0 0
    %764 = vmatpush.bf16.msra.mxu0 0
    %765 = vmatpush.bf16.msra.mxu0 0
    %766 = vmatpush.bf16.msra.mxu0 0
    %767 = vmatpush.bf16.msra.mxu0 %v755
    %768 = vmatpush.bf16.msra.mxu0 %v754
    %769 = vmatmul.bf16.gmra.mxu0 %v759
    %v770 = vpop.f32.mrf.mxu0
    %v771 = vadd.f32 %v744, %v770
    %v772 = vpop.f32.mrf.mxu0
    %v773 = vadd.f32 %v744, %v772
    %774 = vdwg.mxu0
    %s775 = scalar_lea.vmem %s7, 16
    %v776 = vld [vmem:[%s775] sm:$0xf]
    %v777 = vld [vmem:[%s775 + $0x4] sm:$0xf]
    %v778 = vld [vmem:[%s775 + $0x8] sm:$0xf]
    %v779 = vld [vmem:[%s775 + $0xc] sm:$0xf]
    %s780 = scalar_lea.vmem [#allocation10], 1
    %v781 = vld [vmem:[%s780] sm:$0x1]
    %v783 = vperm.slane %v781, 0
    %v789 = vunpack.c.l.b16 %v776
    %v790 = vunpack.c.l.b16 %v777
    %v791 = vunpack.c.l.b16 %v778
    %v792 = vunpack.c.l.b16 %v779
    %v793 = vpack.c.b16 %v790, %v789
    %v794 = vpack.c.b16 %v792, %v791
    %797 = vmatpush.bf16.msra.mxu0 0
    %798 = vmatpush.bf16.msra.mxu0 0
    %799 = vmatpush.bf16.msra.mxu0 0
    %800 = vmatpush.bf16.msra.mxu0 0
    %801 = vmatpush.bf16.msra.mxu0 0
    %802 = vmatpush.bf16.msra.mxu0 0
    %803 = vmatpush.bf16.msra.mxu0 %v794
    %804 = vmatpush.bf16.msra.mxu0 %v793
    %805 = vmatmul.bf16.gmra.mxu0 %v759
    %v806 = vpop.f32.mrf.mxu0
    %v807 = vadd.f32 %v783, %v806
    %v808 = vpop.f32.mrf.mxu0
    %v809 = vadd.f32 %v783, %v808
    %810 = vdwg.mxu0
    %v811 = vpack.c.bf16 %v807, %v807
    %v812 = vpack.c.bf16 %v809, %v809
    %v815 = vunpack.c.l.b16 %v811
    %v816 = vunpack.c.l.b16 %v812
    %v817 = vpack.c.b16 %v816, %v815
    %v819 = vunpack.c.l.bf16 %v817
    %v820 = vunpack.c.h.bf16 %v817
    %v821 = vmul.f32 %v819, %v346
    %v822 = vmul.f32 %v820, %v347
    %v823 = vmul.f32 %v819, %v348
    %v824 = vmul.f32 %v820, %v349
    %v825 = vmul.f32 %v819, %v350
    %v826 = vmul.f32 %v820, %v351
    %v827 = vmul.f32 %v819, %v352
    %v828 = vmul.f32 %v820, %v353
    %v829 = vpack.c.bf16 %v822, %v821
    %v830 = vpack.c.bf16 %v824, %v823
    %v831 = vpack.c.bf16 %v826, %v825
    %v832 = vpack.c.bf16 %v828, %v827
    %v833 = vpack.c.bf16 %v773, %v771
    %v835 = vsel %vm367, %v833, 0
    %v838 = vsel %vm367, %v829, 0
    %v841 = vsel %vm367, %v830, 0
    %v844 = vsel %vm367, %v831, 0
    %v847 = vsel %vm367, %v832, 0
    %849 = vmatpush.bf16.xpose.msra.mxu0 0
    %850 = vmatpush.bf16.xpose.msra.mxu0 0
    %851 = vmatpush.bf16.xpose.msra.mxu0 0
    %852 = vmatpush.bf16.xpose.msra.mxu0 0
    %853 = vmatpush.bf16.xpose.msra.mxu0 %v847
    %854 = vmatpush.bf16.xpose.msra.mxu0 %v844
    %855 = vmatpush.bf16.xpose.msra.mxu0 %v841
    %856 = vmatpush.bf16.xpose.msra.mxu0 %v838
    %857 = vmatmul.bf16.gmra.mxu0 %v835
    %v858 = vpop.f32.mrf.mxu0
    %v859 = vadd.f32 %v184, %v858
    %v860 = vpop.f32.mrf.mxu0
    %v861 = vadd.f32 %v185, %v860
    %862 = vdwg.mxu0
    %v863 = vmul.f32 %v859, 1.442695
    %v864 = vpow.pop %v863
    %v865 = vmul.f32 %v861, 1.442695
    %v866 = vpow.pop %v865
    %v867 = vpack.c.bf16 %v866, %v864
    %v869 = vsel %vm367, %v867, 0
    %871 = vmatpush.bf16.msra.mxu0 0
    %872 = vmatpush.bf16.msra.mxu0 0
    %873 = vmatpush.bf16.msra.mxu0 0
    %874 = vmatpush.bf16.msra.mxu0 0
    %875 = vmatpush.bf16.msra.mxu0 %v421
    %876 = vmatpush.bf16.msra.mxu0 %v420
    %877 = vmatpush.bf16.msra.mxu0 %v419
    %878 = vmatpush.bf16.msra.mxu0 %v418
    %879 = vmatmul.bf16.gmra.mxu0 %v869
    %v880 = vpop.f32.mrf.mxu0
    %v881 = vadd.f32 0.0, %v880
    %v882 = vpop.f32.mrf.mxu0
    %v883 = vadd.f32 0.0, %v882
    %884 = vdwg.mxu0
    %v885 = vrcp.pop %v881
    %v886 = vrcp.pop %v883
    %v887 = vmul.f32 %v864, %v885
    %v888 = vmul.f32 %v866, %v886
    %v889 = vpack.c.bf16 %v888, %v887
    %v891 = vsel %vm367, %v889, 0
    %893 = vmatpush.bf16.msra.mxu0 0
    %894 = vmatpush.bf16.msra.mxu0 0
    %895 = vmatpush.bf16.msra.mxu0 0
    %896 = vmatpush.bf16.msra.mxu0 0
    %897 = vmatpush.bf16.msra.mxu0 %v832
    %898 = vmatpush.bf16.msra.mxu0 %v831
    %899 = vmatpush.bf16.msra.mxu0 %v830
    %900 = vmatpush.bf16.msra.mxu0 %v829
    %901 = vmatmul.bf16.gmra.mxu0 %v891
    %v902 = vpop.f32.mrf.mxu0
    %v903 = vadd.f32 0.0, %v902
    %v904 = vpop.f32.mrf.mxu0
    %v905 = vadd.f32 0.0, %v904
    %906 = vdwg.mxu0
    %v907 = vpack.c.bf16 %v905, %v903
    %s908 = scalar_lea.vmem %s9, 32
    %v909 = vld [vmem:[%s908] sm:$0xf]
    %v910 = vld [vmem:[%s908 + $0x4] sm:$0xf]
    %v911 = vld [vmem:[%s908 + $0x8] sm:$0xf]
    %v912 = vld [vmem:[%s908 + $0xc] sm:$0xf]
    %v913 = vld [vmem:[%s908 + $0x10] sm:$0xf]
    %v914 = vld [vmem:[%s908 + $0x14] sm:$0xf]
    %v915 = vld [vmem:[%s908 + $0x18] sm:$0xf]
    %v916 = vld [vmem:[%s908 + $0x1c] sm:$0xf]
    %s917 = scalar_lea.vmem [#allocation11], 1
    %v918 = vld [vmem:[%s917] sm:$0x1]
    %v920 = vperm.slane %v918, 0
    %v930 = vunpack.c.l.b16 %v909
    %v931 = vunpack.c.l.b16 %v910
    %v932 = vunpack.c.l.b16 %v911
    %v933 = vunpack.c.l.b16 %v912
    %v934 = vunpack.c.l.b16 %v913
    %v935 = vunpack.c.l.b16 %v914
    %v936 = vunpack.c.l.b16 %v915
    %v937 = vunpack.c.l.b16 %v916
    %v938 = vpack.c.b16 %v931, %v930
    %v939 = vpack.c.b16 %v933, %v932
    %v940 = vpack.c.b16 %v935, %v934
    %v941 = vpack.c.b16 %v937, %v936
    %v947 = vsel %vm367, %v907, 0
    %949 = vmatpush.bf16.msra.mxu0 0
    %950 = vmatpush.bf16.msra.mxu0 0
    %951 = vmatpush.bf16.msra.mxu0 0
    %952 = vmatpush.bf16.msra.mxu0 0
    %953 = vmatpush.bf16.msra.mxu0 %v941
    %954 = vmatpush.bf16.msra.mxu0 %v940
    %955 = vmatpush.bf16.msra.mxu0 %v939
    %956 = vmatpush.bf16.msra.mxu0 %v938
    %957 = vmatmul.bf16.gmra.mxu0 %v947
    %v958 = vpop.f32.mrf.mxu0
    %v959 = vadd.f32 %v920, %v958
    %v960 = vpop.f32.mrf.mxu0
    %v961 = vadd.f32 %v920, %v960
    %962 = vdwg.mxu0
    %v963 = vadd.f32 %v731, %v959
    %v964 = vadd.f32 %v732, %v961
    %v965 = vsel %vm205, %v963, 0.0
    %966 = vadd.xlane.f32.xlu0 %v965
    %v967 = vpop.xlane.xlu0 %966
    %v968 = vsel %vm205, %v964, 0.0
    %969 = vadd.xlane.f32.xlu0 %v968
    %v970 = vpop.xlane.xlu0 %969
    %v971 = vmul.f32 %v967, %v218
    %v972 = vmul.f32 %v970, %v218
    %v973 = vsub.f32 %v963, %v971
    %v974 = vsub.f32 %v964, %v972
    %v975 = vmul.f32 %v973, %v973
    %v976 = vmul.f32 %v974, %v974
    %v977 = vsel %vm205, %v975, 0.0
    %978 = vadd.xlane.f32.xlu0 %v977
    %v979 = vpop.xlane.xlu0 %978
    %v980 = vsel %vm205, %v976, 0.0
    %981 = vadd.xlane.f32.xlu0 %v980
    %v982 = vpop.xlane.xlu0 %981
    %v983 = vmul.f32 %v979, %v218
    %v984 = vmul.f32 %v982, %v218
    %v985 = vadd.f32 %v983, 1e-12
    %v986 = vadd.f32 %v984, 1e-12
    %v987 = vrsqrt.pop %v985
    %v988 = vmul.f32 %v987, %v985
    %v989 = vmul.f32 %v988, %v987
    %v990 = vmul.f32 0.5, %v989
    %v991 = vsub.f32 1.5, %v990
    %v992 = vmul.f32 %v987, %v991
    %vm993 = vweird.f32 %v985
    %vm994 = vweird.f32 %v987
    %vm995 = vmor %vm993, %vm994
    %v996 = vsel %vm995, %v987, %v992
    %v997 = vrsqrt.pop %v986
    %v998 = vmul.f32 %v997, %v986
    %v999 = vmul.f32 %v998, %v997
    %v1000 = vmul.f32 0.5, %v999
    %v1001 = vsub.f32 1.5, %v1000
    %v1002 = vmul.f32 %v997, %v1001
    %vm1003 = vweird.f32 %v986
    %vm1004 = vweird.f32 %v997
    %vm1005 = vmor %vm1003, %vm1004
    %v1006 = vsel %vm1005, %v997, %v1002
    %v1007 = vmul.f32 %v973, %v996
    %v1008 = vmul.f32 %v974, %v1006
    %v1009 = vperm.slane %v734, 0
    %v1010 = vmul.f32 %v1007, %v1009
    %v1011 = vmul.f32 %v1008, %v1009
    %v1012 = vperm.slane %v734, 1
    %v1013 = vadd.f32 %v1010, %v1012
    %v1014 = vadd.f32 %v1011, %v1012
    %v1015 = vpack.c.bf16 %v1014, %v1013
    %s1016 = scalar_lea.vmem %s11, 16
    %v1017 = vld [vmem:[%s1016] sm:$0xf]
    %v1018 = vld [vmem:[%s1016 + $0x4] sm:$0xf]
    %v1019 = vld [vmem:[%s1016 + $0x8] sm:$0xf]
    %v1020 = vld [vmem:[%s1016 + $0xc] sm:$0xf]
    %s1021 = scalar_lea.vmem %s12, 1
    %v1022 = vld [vmem:[%s1021] sm:$0x1]
    %v1024 = vperm.slane %v1022, 0
    %v1030 = vunpack.c.l.b16 %v1017
    %v1031 = vunpack.c.l.b16 %v1018
    %v1032 = vunpack.c.l.b16 %v1019
    %v1033 = vunpack.c.l.b16 %v1020
    %v1034 = vpack.c.b16 %v1031, %v1030
    %v1035 = vpack.c.b16 %v1033, %v1032
    %v1039 = vsel %vm205, %v1015, 0
    %1041 = vmatpush.bf16.msra.mxu0 0
    %1042 = vmatpush.bf16.msra.mxu0 0
    %1043 = vmatpush.bf16.msra.mxu0 0
    %1044 = vmatpush.bf16.msra.mxu0 0
    %1045 = vmatpush.bf16.msra.mxu0 0
    %1046 = vmatpush.bf16.msra.mxu0 0
    %1047 = vmatpush.bf16.msra.mxu0 %v1035
    %1048 = vmatpush.bf16.msra.mxu0 %v1034
    %1049 = vmatmul.bf16.gmra.mxu0 %v1039
    %v1050 = vpop.f32.mrf.mxu0
    %v1051 = vadd.f32 %v1024, %v1050
    %v1052 = vpop.f32.mrf.mxu0
    %v1053 = vadd.f32 %v1024, %v1052
    %1054 = vdwg.mxu0
    %v1055 = vmul.f32 %v1051, %v1051
    %v1056 = vmul.f32 %v1053, %v1053
    %v1057 = vmul.f32 %v1051, %v1055
    %v1058 = vmul.f32 %v1053, %v1056
    %v1059 = vmul.f32 %v1057, 0.044715
    %v1060 = vmul.f32 %v1058, 0.044715
    %v1061 = vadd.f32 %v1051, %v1059
    %v1062 = vadd.f32 %v1053, %v1060
    %v1063 = vmul.f32 %v1061, 0.7978846
    %v1064 = vmul.f32 %v1062, 0.7978846
    %v1065 = vtanh.pop %v1063
    %v1066 = vtanh.pop %v1064
    %v1067 = vadd.f32 %v1065, 1.0
    %v1068 = vadd.f32 %v1066, 1.0
    %v1069 = vmul.f32 %v1067, 0.5
    %v1070 = vmul.f32 %v1068, 0.5
    %v1071 = vmul.f32 %v1051, %v1069
    %v1072 = vmul.f32 %v1053, %v1070
    %v1073 = vpack.c.bf16 %v1072, %v1071
    %s1074 = scalar_lea.vmem %s13, 32
    %v1075 = vld [vmem:[%s1074] sm:$0xf]
    %v1076 = vld [vmem:[%s1074 + $0x4] sm:$0xf]
    %v1077 = vld [vmem:[%s1074 + $0x8] sm:$0xf]
    %v1078 = vld [vmem:[%s1074 + $0xc] sm:$0xf]
    %v1079 = vld [vmem:[%s1074 + $0x10] sm:$0xf]
    %v1080 = vld [vmem:[%s1074 + $0x14] sm:$0xf]
    %v1081 = vld [vmem:[%s1074 + $0x18] sm:$0xf]
    %v1082 = vld [vmem:[%s1074 + $0x1c] sm:$0xf]
    %s1083 = scalar_lea.vmem [#allocation13], 1
    %v1084 = vld [vmem:[%s1083] sm:$0x1]
    %v1086 = vperm.slane %v1084, 0
    %v1096 = vunpack.c.l.b16 %v1075
    %v1097 = vunpack.c.l.b16 %v1076
    %v1098 = vunpack.c.l.b16 %v1077
    %v1099 = vunpack.c.l.b16 %v1078
    %v1100 = vunpack.c.l.b16 %v1079
    %v1101 = vunpack.c.l.b16 %v1080
    %v1102 = vunpack.c.l.b16 %v1081
    %v1103 = vunpack.c.l.b16 %v1082
    %v1104 = vpack.c.b16 %v1097, %v1096
    %v1105 = vpack.c.b16 %v1099, %v1098
    %v1106 = vpack.c.b16 %v1101, %v1100
    %v1107 = vpack.c.b16 %v1103, %v1102
    %v1113 = vsel %vm367, %v1073, 0
    %1115 = vmatpush.bf16.msra.mxu0 0
    %1116 = vmatpush.bf16.msra.mxu0 0
    %1117 = vmatpush.bf16.msra.mxu0 0
    %1118 = vmatpush.bf16.msra.mxu0 0
    %1119 = vmatpush.bf16.msra.mxu0 %v1107
    %1120 = vmatpush.bf16.msra.mxu0 %v1106
    %1121 = vmatpush.bf16.msra.mxu0 %v1105
    %1122 = vmatpush.bf16.msra.mxu0 %v1104
    %1123 = vmatmul.bf16.gmra.mxu0 %v1113
    %v1124 = vpop.f32.mrf.mxu0
    %v1125 = vadd.f32 %v1086, %v1124
    %v1126 = vpop.f32.mrf.mxu0
    %v1127 = vadd.f32 %v1086, %v1126
    %1128 = vdwg.mxu0
    %v1129 = vadd.f32 %v1013, %v1125
    %v1130 = vadd.f32 %v1014, %v1127
    %v1131 = vsel %vm205, %v1129, 0.0
    %1132 = vadd.xlane.f32.xlu0 %v1131
    %v1133 = vpop.xlane.xlu0 %1132
    %v1134 = vsel %vm205, %v1130, 0.0
    %1135 = vadd.xlane.f32.xlu0 %v1134
    %v1136 = vpop.xlane.xlu0 %1135
    %v1137 = vmul.f32 %v1133, %v218
    %v1138 = vmul.f32 %v1136, %v218
    %v1139 = vsub.f32 %v1129, %v1137
    %v1140 = vsub.f32 %v1130, %v1138
    %v1141 = vmul.f32 %v1139, %v1139
    %v1142 = vmul.f32 %v1140, %v1140
    %v1143 = vsel %vm205, %v1141, 0.0
    %1144 = vadd.xlane.f32.xlu0 %v1143
    %v1145 = vpop.xlane.xlu0 %1144
    %v1146 = vsel %vm205, %v1142, 0.0
    %1147 = vadd.xlane.f32.xlu0 %v1146
    %v1148 = vpop.xlane.xlu0 %1147
    %v1149 = vmul.f32 %v1145, %v218
    %v1150 = vmul.f32 %v1148, %v218
    %v1151 = vadd.f32 %v1149, 1e-12
    %v1152 = vadd.f32 %v1150, 1e-12
    %v1153 = vrsqrt.pop %v1151
    %v1154 = vmul.f32 %v1153, %v1151
    %v1155 = vmul.f32 %v1154, %v1153
    %v1156 = vmul.f32 0.5, %v1155
    %v1157 = vsub.f32 1.5, %v1156
    %v1158 = vmul.f32 %v1153, %v1157
    %vm1159 = vweird.f32 %v1151
    %vm1160 = vweird.f32 %v1153
    %vm1161 = vmor %vm1159, %vm1160
    %v1162 = vsel %vm1161, %v1153, %v1158
    %v1163 = vrsqrt.pop %v1152
    %v1164 = vmul.f32 %v1163, %v1152
    %v1165 = vmul.f32 %v1164, %v1163
    %v1166 = vmul.f32 0.5, %v1165
    %v1167 = vsub.f32 1.5, %v1166
    %v1168 = vmul.f32 %v1163, %v1167
    %vm1169 = vweird.f32 %v1152
    %vm1170 = vweird.f32 %v1163
    %vm1171 = vmor %vm1169, %vm1170
    %v1172 = vsel %vm1171, %v1163, %v1168
    %v1173 = vmul.f32 %v1139, %v1162
    %v1174 = vmul.f32 %v1140, %v1172
    %v1175 = vperm.slane %v734, 2
    %v1176 = vmul.f32 %v1173, %v1175
    %v1177 = vmul.f32 %v1174, %v1175
    %v1178 = vperm.slane %v734, 3
    %v1179 = vadd.f32 %v1176, %v1178
    %v1180 = vadd.f32 %v1177, %v1178
    %v1182 = vrot.slane %v1180, 7
    %vm1184 = vcmask 1040384
    %v1185 = vsel %vm1184, %v1179, %v1182
    %v1186 = vpack.c.bf16 %v1185, %v1185
    %v1187 = vld [vmem:[#allocation14] sm:$0xf]
    %v1188 = vld [vmem:[#allocation14 + $0x4] sm:$0xf]
    %v1189 = vld [vmem:[#allocation14 + $0x8] sm:$0xf]
    %v1190 = vld [vmem:[#allocation14 + $0xc] sm:$0xf]
    %v1191 = vld [vmem:[%s17] sm:$0x1]
    %v1193 = vperm.slane %v1191, 0
    %v1199 = vunpack.c.l.b16 %v1187
    %v1200 = vunpack.c.l.b16 %v1188
    %v1201 = vunpack.c.l.b16 %v1189
    %v1202 = vunpack.c.l.b16 %v1190
    %v1203 = vpack.c.b16 %v1200, %v1199
    %v1204 = vpack.c.b16 %v1202, %v1201
    %v1208 = vsel %vm205, %v1186, 0
    %1210 = vmatpush.bf16.msra.mxu0 0
    %1211 = vmatpush.bf16.msra.mxu0 0
    %1212 = vmatpush.bf16.msra.mxu0 0
    %1213 = vmatpush.bf16.msra.mxu0 0
    %1214 = vmatpush.bf16.msra.mxu0 0
    %1215 = vmatpush.bf16.msra.mxu0 0
    %1216 = vmatpush.bf16.msra.mxu0 %v1204
    %1217 = vmatpush.bf16.msra.mxu0 %v1203
    %1218 = vmatmul.bf16.gmra.mxu0 %v1208
    %v1219 = vpop.f32.mrf.mxu0
    %v1220 = vadd.f32 %v1193, %v1219
    %v1221 = vpop.f32.mrf.mxu0
    %1222 = vdwg.mxu0
    %1223 = vst [vmem:[#allocation16] sm:$0x3] %v1220
    // Predicated region
    $region106: #{tpu_custom_call.1} parent=1 // pred_check
      _
    $region107: #{tpu_custom_call.1} parent=1 // pred_check_branch
      %1225 = sbr.rel (0) target = $region109
    $region108: #{tpu_custom_call.1} parent=1 // pred_region
      %1227 = vsyncadd [#allocation4], 0
      %s1229 = sshll.u32 [#allocation16], 4
      %s1230 = int_to_ptr.vmem [resolvable:$true] %s1229
      %s1231 = sshll.u32 %s18, 4
      %s1232 = int_to_ptr.hbm [resolvable:$true] %s1231
      %1234 = dma.vmem_to_hbm [thread:$0]  %s1230, 32, %s1232, [#allocation4]
    $region109: #{tpu_custom_call.1} parent=1 // pred_fallthru
      _
    // Predicated region
    $region110: #{tpu_custom_call.1} parent=1 // pred_check
      _
    $region111: #{tpu_custom_call.1} parent=1 // pred_check_branch
      %1236 = sbr.rel (0) target = $region113
    $region112: #{tpu_custom_call.1} parent=1 // pred_region
      %1238 = dma.done [#allocation4], 32
    $region113: #{tpu_custom_call.1} parent=1 // pred_fallthru
      _
    %1239 = vsyncpa [#allocation3], 1
    %1240 = vsyncpa [#allocation6], 1
    %1241 = vsyncpa [#allocation9], 1
    %1242 = vsyncpa [#allocation12], 1
    %1243 = vsyncpa [#allocation15], 1
    %1244 = vsyncpa [#allocation4], 1

</llo_original>
